<compile_context>
chip_gen: v6e
topology: v6e:2x2x1
jax: 0.10.0
libtpu: 0.0.40
codegen_flags: <defaults>
</compile_context>

<pallas_src>
import functools

import jax
import jax.numpy as jnp
from jax.experimental import pallas as pl
from jax.experimental.pallas import tpu as pltpu  # noqa: F401  (TPU-specific tuning hooks)


# ----------------------------------------------------------------------------
# Fused Pallas kernel
# ----------------------------------------------------------------------------

def vae_fused_kernel(x_ref, eps_ref, wx_ref, bx_ref, whh_enc_ref, whh_dec_ref,
                     wmusig_ref, wlh_ref, wout_ref, bmisc_ref,
                     msl_ref, out_ref, *, T, B, I, H, L, teacher_forcing):
    f32 = jnp.float32
    H2, H4, H8 = 2 * H, 4 * H, 8 * H

    # ---- hoisted input projections (+ folded biases): ONE matmul for all three LSTMs ----
    # x_ref is (T*B, I) time-major; wx_ref is (I, 20H) = [Wih_fwd scattered | Wih_bwd scattered | Wih_dec]
    xg = jnp.dot(x_ref[...], wx_ref[...], preferred_element_type=f32) + bx_ref[...]
    xg_f = xg[:, 0:H8]                    # fwd contributions, scattered into fused 8H gate layout
    xg_b = xg[:, H8:2 * H8]               # bwd contributions, scattered into fused 8H gate layout
    xg_d = xg[:, 2 * H8:2 * H8 + H4]      # decoder gate input [i|f|g|o]

    whh_enc = whh_enc_ref[...]            # (2H, 8H) block-structured (fwd rows -> fwd cols, bwd -> bwd)
    whh_dec = whh_dec_ref[...]            # (H, 4H)

    # ---- hoisted lane masks for the single-tanh gate activation ----
    def gate_masks(width, g_lo, g_hi):
        lane = jax.lax.broadcasted_iota(jnp.int32, (B, width), 1)
        is_g = (lane >= g_lo) & (lane < g_hi)
        scale = jnp.where(is_g, 1.0, 0.5).astype(f32)   # 1.0 on tanh(g) lanes, 0.5 on sigmoid lanes
        shift = jnp.where(is_g, 0.0, 0.5).astype(f32)
        return scale, shift

    esc, esh = gate_masks(H8, 4 * H, 6 * H)   # fused encoder: gate layout [i|f|g|o], each 2H wide
    dsc, dsh = gate_masks(H4, 2 * H, 3 * H)   # decoder:       gate layout [i|f|g|o], each H wide

    def cell(gx, h, c, whh, scale, shift, gw):
        gates = gx + jnp.dot(h, whh, preferred_element_type=f32)
        # sigmoid(x) = 0.5*(1 + tanh(0.5*x)); g-lanes pass through (scale=1, shift=0).
        act = scale * jnp.tanh(scale * gates) + shift
        i = act[:, 0 * gw:1 * gw]
        f = act[:, 1 * gw:2 * gw]
        g = act[:, 2 * gw:3 * gw]
        o = act[:, 3 * gw:4 * gw]
        c_new = f * c + i * g
        h_new = o * jnp.tanh(c_new)
        return h_new, c_new

    # ---- fused bidirectional encoder: state = [h_fwd | h_bwd], T serial steps ----
    h = jnp.zeros((B, H2), f32)
    c = jnp.zeros((B, H2), f32)
    for s in range(T):
        gx = xg_f[s * B:(s + 1) * B, :] + xg_b[(T - 1 - s) * B:(T - s) * B, :]
        h, c = cell(gx, h, c, whh_enc, esc, esh, H2)
    hidden = h                                        # (B, 2H) == concat(final fwd h, final bwd h)

    # ---- hidden_to_mu / hidden_to_sig / reparameterization ----
    ms = jnp.dot(hidden, wmusig_ref[...], preferred_element_type=f32) + bmisc_ref[:, 0:2 * L]
    mu = ms[:, 0:L]
    sig = ms[:, L:2 * L]
    lat = jnp.exp(0.5 * sig) * eps_ref[...] + mu      # == sqrt(exp(sig)) * eps + mu
    msl_ref[...] = jnp.concatenate([mu, sig, lat], axis=1)

    # ---- decoder (teacher forcing: input at step t is target at t-1; zeros at t=0) ----
    h = jnp.tanh(jnp.dot(lat, wlh_ref[...], preferred_element_type=f32)
                 + bmisc_ref[:, 2 * L:2 * L + H])
    c = jnp.zeros((B, H), f32)
    # bias-only gate input (x contribution is zero): used at t=0 and when not teacher forcing.
    # TODO(synk): teacher_forcing=False feeds zeros (stand-in), not autoregressive feedback.
    gx0 = jnp.zeros((B, H4), f32) + bx_ref[:, 2 * H8:2 * H8 + H4]
    hs = []
    for t in range(T):
        gx = xg_d[(t - 1) * B:t * B, :] if (teacher_forcing and t > 0) else gx0
        h, c = cell(gx, h, c, whh_dec, dsc, dsh, H)
        hs.append(h)

    # ---- hoisted output projection: one block-diagonal matmul, single lane-dense store ----
    hcat = jnp.concatenate(hs, axis=1)                # (B, T*H)
    out_ref[...] = (jnp.dot(hcat, wout_ref[...], preferred_element_type=f32)
                    + bmisc_ref[:, 2 * L + H:2 * L + H + T * I])


# ----------------------------------------------------------------------------
# Wrapper around pallas_call
# ----------------------------------------------------------------------------

def _full_spec(shape):
    return pl.BlockSpec(shape, lambda: (0,) * len(shape))


def vae_pallas(packed, x, eps, *, teacher_forcing=True):
    """x: (B, T, I) float32, eps: (B, L). Returns (mu, sig, latent, x_reconst)."""
    B, T, I = x.shape
    H = packed["whh_dec"].shape[0]
    L = packed["w_lh"].shape[0]

    # Time-major flatten (tiny ~1 KiB copy) so every per-step (B, I) slab in the kernel
    # is a contiguous static row block.
    x2 = jnp.transpose(x, (1, 0, 2)).reshape(T * B, I)

    kernel = functools.partial(
        vae_fused_kernel, T=T, B=B, I=I, H=H, L=L, teacher_forcing=teacher_forcing)

    args = (
        x2, eps,
        packed["w_x"], packed["b_x"],
        packed["whh_enc"], packed["whh_dec"],
        packed["w_musig"], packed["w_lh"],
        packed["w_out_bd"], packed["b_misc"],
    )

    msl, out_flat = pl.pallas_call(
        kernel,
        out_shape=(
            jax.ShapeDtypeStruct((B, 3 * L), jnp.float32),    # [mu | sig | latent]
            jax.ShapeDtypeStruct((B, T * I), jnp.float32),    # lane-dense logits
        ),
        in_specs=[_full_spec(a.shape) for a in args],
        out_specs=(_full_spec((B, 3 * L)), _full_spec((B, T * I))),
    )(*args)

    mu = msl[:, 0:L]
    sig = msl[:, L:2 * L]
    lat = msl[:, 2 * L:3 * L]
    return mu, sig, lat, out_flat.reshape(B, T, I)


@functools.partial(jax.jit, static_argnames=("teacher_forcing",))
def vae_forward(packed, x, eps, teacher_forcing=True):
    return vae_pallas(packed, x, eps, teacher_forcing=teacher_forcing)


# ----------------------------------------------------------------------------
# Parameters: unpacked (reference) + packing for the fused kernel
# ----------------------------------------------------------------------------

def init_params(key, input_size, hidden_size, latent_size):
    H, I, L = hidden_size, input_size, latent_size

    def u(k, shape, scale):
        return jax.random.uniform(k, shape, jnp.float32, -scale, scale)

    ks = jax.random.split(key, 16)
    s_h = 1.0 / jnp.sqrt(H)
    s_2h = 1.0 / jnp.sqrt(2 * H)
    s_l = 1.0 / jnp.sqrt(L)
    return {
        # encoder (bidirectional LSTM), gate order [i, f, g, o]
        "enc_wih_f": u(ks[0], (I, 4 * H), s_h),
        "enc_whh_f": u(ks[1], (H, 4 * H), s_h),
        "enc_b_f":   u(ks[2], (1, 4 * H), s_h),
        "enc_wih_b": u(ks[3], (I, 4 * H), s_h),
        "enc_whh_b": u(ks[4], (H, 4 * H), s_h),
        "enc_b_b":   u(ks[5], (1, 4 * H), s_h),
        # hidden_to_mu / hidden_to_sig : Linear(2H, L)
        "wmu":  u(ks[6], (2 * H, L), s_2h),
        "bmu":  u(ks[7], (1, L), s_2h),
        "wsig": u(ks[8], (2 * H, L), s_2h),
        "bsig": u(ks[9], (1, L), s_2h),
        # decoder
        "dec_wlh": u(ks[10], (L, H), s_l),
        "dec_blh": u(ks[11], (1, H), s_l),
        "dec_wih": u(ks[12], (I, 4 * H), s_h),
        "dec_whh": u(ks[13], (H, 4 * H), s_h),
        "dec_b":   u(ks[14], (1, 4 * H), s_h),
        "dec_wout": u(ks[15], (H, I), s_h),
        "dec_bout": jnp.zeros((1, I), jnp.float32),
    }


def pack_params(p, T):
    """Prebuild the packed / block-structured buffers the fused kernel consumes.

    Fused encoder gate layout (width 8H, gate-type major): [i_f|i_b|f_f|f_b|g_f|g_b|o_f|o_b],
    i.e. gate k occupies cols [k*2H, (k+1)*2H) with fwd in the first H lanes, bwd in the
    second H lanes.  The carried state is h = [h_fwd | h_bwd] (B, 2H).
    """
    H = p["enc_whh_f"].shape[0]
    I = p["enc_wih_f"].shape[0]
    H2, H8 = 2 * H, 8 * H

    wihf_s = jnp.zeros((I, H8), jnp.float32)
    wihb_s = jnp.zeros((I, H8), jnp.float32)
    bf_s = jnp.zeros((1, H8), jnp.float32)
    bb_s = jnp.zeros((1, H8), jnp.float32)
    whh_enc = jnp.zeros((H2, H8), jnp.float32)
    for k in range(4):                       # gate order i, f, g, o
        fwd = slice(k * H2, k * H2 + H)
        bwd = slice(k * H2 + H, (k + 1) * H2)
        src = slice(k * H, (k + 1) * H)
        wihf_s = wihf_s.at[:, fwd].set(p["enc_wih_f"][:, src])
        wihb_s = wihb_s.at[:, bwd].set(p["enc_wih_b"][:, src])
        bf_s = bf_s.at[:, fwd].set(p["enc_b_f"][:, src])
        bb_s = bb_s.at[:, bwd].set(p["enc_b_b"][:, src])
        whh_enc = whh_enc.at[0:H, fwd].set(p["enc_whh_f"][:, src])
        whh_enc = whh_enc.at[H:H2, bwd].set(p["enc_whh_b"][:, src])

    w_x = jnp.concatenate([wihf_s, wihb_s, p["dec_wih"]], axis=1)        # (I, 20H)
    b_x = jnp.concatenate([bf_s, bb_s, p["dec_b"]], axis=1)              # (1, 20H)

    w_musig = jnp.concatenate([p["wmu"], p["wsig"]], axis=1)             # (2H, 2L)

    # block-diagonal output projection: (T*H, T*I) with dec_wout repeated on the diagonal
    Iout = p["dec_wout"].shape[1]
    w_out_bd = jnp.zeros((T * H, T * Iout), jnp.float32)
    for t in range(T):
        w_out_bd = w_out_bd.at[t * H:(t + 1) * H, t * Iout:(t + 1) * Iout].set(p["dec_wout"])

    b_misc = jnp.concatenate(
        [p["bmu"], p["bsig"], p["dec_blh"], jnp.tile(p["dec_bout"], (1, T))], axis=1)

    return {
        "w_x": w_x, "b_x": b_x,
        "whh_enc": whh_enc, "whh_dec": p["dec_whh"],
        "w_musig": w_musig, "w_lh": p["dec_wlh"],
        "w_out_bd": w_out_bd, "b_misc": b_misc,
    }


# ----------------------------------------------------------------------------
# Pure-JAX reference (straightforward, unpacked params) for numerical validation
# ----------------------------------------------------------------------------

def vae_reference(p, x, eps, teacher_forcing=True):
    B, T, I = x.shape
    H = p["enc_whh_f"].shape[0]

    def cell(xt, h, c, wih, whh, b):
        g = xt @ wih + h @ whh + b
        i = jax.nn.sigmoid(g[:, 0:H])
        f = jax.nn.sigmoid(g[:, H:2 * H])
        gg = jnp.tanh(g[:, 2 * H:3 * H])
        o = jax.nn.sigmoid(g[:, 3 * H:4 * H])
        c = f * c + i * gg
        return o * jnp.tanh(c), c

    zh = jnp.zeros((B, H), jnp.float32)
    h, c = zh, zh
    for t in range(T):
        h, c = cell(x[:, t], h, c, p["enc_wih_f"], p["enc_whh_f"], p["enc_b_f"])
    hf = h
    h, c = zh, zh
    for t in reversed(range(T)):
        h, c = cell(x[:, t], h, c, p["enc_wih_b"], p["enc_whh_b"], p["enc_b_b"])
    hb = h
    hidden = jnp.concatenate([hf, hb], axis=1)
    mu = hidden @ p["wmu"] + p["bmu"]
    sig = hidden @ p["wsig"] + p["bsig"]
    lat = jnp.exp(0.5 * sig) * eps + mu
    h = jnp.tanh(lat @ p["dec_wlh"] + p["dec_blh"])
    c = zh
    outs = []
    zero_x = jnp.zeros((B, I), jnp.float32)
    for t in range(T):
        xt = x[:, t - 1] if (teacher_forcing and t > 0) else zero_x
        h, c = cell(xt, h, c, p["dec_wih"], p["dec_whh"], p["dec_b"])
        outs.append(h @ p["dec_wout"] + p["dec_bout"])
    return mu, sig, lat, jnp.stack(outs, axis=1)


# ----------------------------------------------------------------------------
# Demo
# ----------------------------------------------------------------------------

if __name__ == "__main__":
    B, T, I, H, L = 2, 8, 16, 32, 16

    key = jax.random.PRNGKey(0)
    k_param, k_x, k_eps = jax.random.split(key, 3)

    params = init_params(k_param, input_size=I, hidden_size=H, latent_size=L)
    packed = pack_params(params, T)                          # prebuilt once, outside the jit
    x = jax.random.normal(k_x, (B, T, I), jnp.float32)
    eps = jax.random.normal(k_eps, (B, L), jnp.float32)      # eps = randn_like(mu)

    mu, sig, latent, x_reconst = vae_forward(packed, x, eps, teacher_forcing=True)
    jax.block_until_ready((mu, sig, latent, x_reconst))

    assert mu.shape == (B, L)
    assert sig.shape == (B, L)
    assert latent.shape == (B, L)
    assert x_reconst.shape == (B, T, I)
    assert all(bool(jnp.all(jnp.isfinite(a))) for a in (mu, sig, latent, x_reconst))

    # numerical check against the plain-JAX reference (loose tol: MXU default precision)
    r_mu, r_sig, r_lat, r_xr = jax.jit(
        functools.partial(vae_reference, teacher_forcing=True))(params, x, eps)
    for got, ref, name in ((mu, r_mu, "mu"), (sig, r_sig, "sig"),
                           (latent, r_lat, "latent"), (x_reconst, r_xr, "x_reconst")):
        err = float(jnp.max(jnp.abs(got - ref)))
        assert err < 5e-2, f"{name} mismatch vs reference: max abs err {err}"

    print("KERNEL_OK")
</pallas_src>

<mosaic_0001>
module attributes {stable_mosaic.version = 11 : i64} {
  func.func @vae_fused_kernel(%arg0: memref<16x16xf32, #tpu.memory_space<vmem>>, %arg1: memref<2x16xf32, #tpu.memory_space<vmem>>, %arg2: memref<16x640xf32, #tpu.memory_space<vmem>>, %arg3: memref<1x640xf32, #tpu.memory_space<vmem>>, %arg4: memref<64x256xf32, #tpu.memory_space<vmem>>, %arg5: memref<32x128xf32, #tpu.memory_space<vmem>>, %arg6: memref<64x32xf32, #tpu.memory_space<vmem>>, %arg7: memref<16x32xf32, #tpu.memory_space<vmem>>, %arg8: memref<256x128xf32, #tpu.memory_space<vmem>>, %arg9: memref<1x192xf32, #tpu.memory_space<vmem>>, %arg10: memref<2x48xf32, #tpu.memory_space<vmem>>, %arg11: memref<2x128xf32, #tpu.memory_space<vmem>>) attributes {dimension_semantics = [], scalar_prefetch = 0 : i64, scratch_operands = 0 : i64, tpu.core_type = #tpu.core_type<tc>} {
    %c0 = arith.constant 0 : index
    %c0_0 = arith.constant 0 : index
    %0 = vector.load %arg0[%c0, %c0_0] : memref<16x16xf32, #tpu.memory_space<vmem>>, vector<16x16xf32>
    %c0_1 = arith.constant 0 : index
    %c0_2 = arith.constant 0 : index
    %1 = vector.load %arg2[%c0_1, %c0_2] : memref<16x640xf32, #tpu.memory_space<vmem>>, vector<16x640xf32>
    %cst = arith.constant dense<0.000000e+00> : vector<16x640xf32>
    %2 = tpu.matmul %0, %1, %cst {dimension_numbers = #tpu.dot_dimension_numbers<[1], [0], [0], [1], [0, 0, 1, 1], [], []>} : vector<16x16xf32>, vector<16x640xf32>, vector<16x640xf32> -> vector<16x640xf32>
    %c0_3 = arith.constant 0 : index
    %c0_4 = arith.constant 0 : index
    %3 = vector.load %arg3[%c0_3, %c0_4] : memref<1x640xf32, #tpu.memory_space<vmem>>, vector<1x640xf32>
    %4 = vector.broadcast %3 : vector<1x640xf32> to vector<16x640xf32>
    %5 = arith.addf %2, %4 : vector<16x640xf32>
    %6 = vector.extract_strided_slice %5 {offsets = [0, 0], sizes = [16, 256], strides = [1, 1]} : vector<16x640xf32> to vector<16x256xf32>
    %7 = vector.extract_strided_slice %5 {offsets = [0, 256], sizes = [16, 256], strides = [1, 1]} : vector<16x640xf32> to vector<16x256xf32>
    %8 = vector.extract_strided_slice %5 {offsets = [0, 512], sizes = [16, 128], strides = [1, 1]} : vector<16x640xf32> to vector<16x128xf32>
    %c0_5 = arith.constant 0 : index
    %c0_6 = arith.constant 0 : index
    %9 = vector.load %arg4[%c0_5, %c0_6] : memref<64x256xf32, #tpu.memory_space<vmem>>, vector<64x256xf32>
    %c0_7 = arith.constant 0 : index
    %c0_8 = arith.constant 0 : index
    %10 = vector.load %arg5[%c0_7, %c0_8] : memref<32x128xf32, #tpu.memory_space<vmem>>, vector<32x128xf32>
    %11 = tpu.iota {dimensions = array<i32: 1>} : vector<2x256xi32>
    %c128_i32 = arith.constant 128 : i32
    %12 = vector.broadcast %c128_i32 : i32 to vector<2x256xi32>
    %13 = arith.cmpi sge, %11, %12 : vector<2x256xi32>
    %c192_i32 = arith.constant 192 : i32
    %14 = vector.broadcast %c192_i32 : i32 to vector<2x256xi32>
    %15 = arith.cmpi slt, %11, %14 : vector<2x256xi32>
    %16 = arith.andi %13, %15 : vector<2x256xi1>
    %cst_9 = arith.constant 1.000000e+00 : f32
    %cst_10 = arith.constant 5.000000e-01 : f32
    %17 = vector.broadcast %cst_9 : f32 to vector<2x256xf32>
    %18 = vector.broadcast %cst_10 : f32 to vector<2x256xf32>
    %19 = arith.select %16, %17, %18 : vector<2x256xi1>, vector<2x256xf32>
    %cst_11 = arith.constant 0.000000e+00 : f32
    %cst_12 = arith.constant 5.000000e-01 : f32
    %20 = vector.broadcast %cst_11 : f32 to vector<2x256xf32>
    %21 = vector.broadcast %cst_12 : f32 to vector<2x256xf32>
    %22 = arith.select %16, %20, %21 : vector<2x256xi1>, vector<2x256xf32>
    %23 = tpu.iota {dimensions = array<i32: 1>} : vector<2x128xi32>
    %c64_i32 = arith.constant 64 : i32
    %24 = vector.broadcast %c64_i32 : i32 to vector<2x128xi32>
    %25 = arith.cmpi sge, %23, %24 : vector<2x128xi32>
    %c96_i32 = arith.constant 96 : i32
    %26 = vector.broadcast %c96_i32 : i32 to vector<2x128xi32>
    %27 = arith.cmpi slt, %23, %26 : vector<2x128xi32>
    %28 = arith.andi %25, %27 : vector<2x128xi1>
    %cst_13 = arith.constant 1.000000e+00 : f32
    %cst_14 = arith.constant 5.000000e-01 : f32
    %29 = vector.broadcast %cst_13 : f32 to vector<2x128xf32>
    %30 = vector.broadcast %cst_14 : f32 to vector<2x128xf32>
    %31 = arith.select %28, %29, %30 : vector<2x128xi1>, vector<2x128xf32>
    %cst_15 = arith.constant 0.000000e+00 : f32
    %cst_16 = arith.constant 5.000000e-01 : f32
    %32 = vector.broadcast %cst_15 : f32 to vector<2x128xf32>
    %33 = vector.broadcast %cst_16 : f32 to vector<2x128xf32>
    %34 = arith.select %28, %32, %33 : vector<2x128xi1>, vector<2x128xf32>
    %cst_17 = arith.constant 0.000000e+00 : f32
    %35 = vector.broadcast %cst_17 : f32 to vector<2x64xf32>
    %cst_18 = arith.constant 0.000000e+00 : f32
    %36 = vector.broadcast %cst_18 : f32 to vector<2x64xf32>
    %37 = vector.extract_strided_slice %6 {offsets = [0, 0], sizes = [2, 256], strides = [1, 1]} : vector<16x256xf32> to vector<2x256xf32>
    %38 = vector.extract_strided_slice %7 {offsets = [14, 0], sizes = [2, 256], strides = [1, 1]} : vector<16x256xf32> to vector<2x256xf32>
    %39 = arith.addf %37, %38 : vector<2x256xf32>
    %cst_19 = arith.constant dense<0.000000e+00> : vector<2x256xf32>
    %40 = tpu.matmul %35, %9, %cst_19 {dimension_numbers = #tpu.dot_dimension_numbers<[1], [0], [0], [1], [0, 0, 1, 1], [], []>} : vector<2x64xf32>, vector<64x256xf32>, vector<2x256xf32> -> vector<2x256xf32>
    %41 = arith.addf %39, %40 : vector<2x256xf32>
    %42 = arith.mulf %19, %41 : vector<2x256xf32>
    %43 = math.tanh %42 : vector<2x256xf32>
    %44 = arith.mulf %19, %43 : vector<2x256xf32>
    %45 = arith.addf %44, %22 : vector<2x256xf32>
    %46 = vector.extract_strided_slice %45 {offsets = [0, 0], sizes = [2, 64], strides = [1, 1]} : vector<2x256xf32> to vector<2x64xf32>
    %47 = vector.extract_strided_slice %45 {offsets = [0, 64], sizes = [2, 64], strides = [1, 1]} : vector<2x256xf32> to vector<2x64xf32>
    %48 = vector.extract_strided_slice %45 {offsets = [0, 128], sizes = [2, 64], strides = [1, 1]} : vector<2x256xf32> to vector<2x64xf32>
    %49 = vector.extract_strided_slice %45 {offsets = [0, 192], sizes = [2, 64], strides = [1, 1]} : vector<2x256xf32> to vector<2x64xf32>
    %50 = arith.mulf %47, %36 : vector<2x64xf32>
    %51 = arith.mulf %46, %48 : vector<2x64xf32>
    %52 = arith.addf %50, %51 : vector<2x64xf32>
    %53 = math.tanh %52 : vector<2x64xf32>
    %54 = arith.mulf %49, %53 : vector<2x64xf32>
    %55 = vector.extract_strided_slice %6 {offsets = [2, 0], sizes = [2, 256], strides = [1, 1]} : vector<16x256xf32> to vector<2x256xf32>
    %56 = vector.extract_strided_slice %7 {offsets = [12, 0], sizes = [2, 256], strides = [1, 1]} : vector<16x256xf32> to vector<2x256xf32>
    %57 = arith.addf %55, %56 : vector<2x256xf32>
    %cst_20 = arith.constant dense<0.000000e+00> : vector<2x256xf32>
    %58 = tpu.matmul %54, %9, %cst_20 {dimension_numbers = #tpu.dot_dimension_numbers<[1], [0], [0], [1], [0, 0, 1, 1], [], []>} : vector<2x64xf32>, vector<64x256xf32>, vector<2x256xf32> -> vector<2x256xf32>
    %59 = arith.addf %57, %58 : vector<2x256xf32>
    %60 = arith.mulf %19, %59 : vector<2x256xf32>
    %61 = math.tanh %60 : vector<2x256xf32>
    %62 = arith.mulf %19, %61 : vector<2x256xf32>
    %63 = arith.addf %62, %22 : vector<2x256xf32>
    %64 = vector.extract_strided_slice %63 {offsets = [0, 0], sizes = [2, 64], strides = [1, 1]} : vector<2x256xf32> to vector<2x64xf32>
    %65 = vector.extract_strided_slice %63 {offsets = [0, 64], sizes = [2, 64], strides = [1, 1]} : vector<2x256xf32> to vector<2x64xf32>
    %66 = vector.extract_strided_slice %63 {offsets = [0, 128], sizes = [2, 64], strides = [1, 1]} : vector<2x256xf32> to vector<2x64xf32>
    %67 = vector.extract_strided_slice %63 {offsets = [0, 192], sizes = [2, 64], strides = [1, 1]} : vector<2x256xf32> to vector<2x64xf32>
    %68 = arith.mulf %65, %52 : vector<2x64xf32>
    %69 = arith.mulf %64, %66 : vector<2x64xf32>
    %70 = arith.addf %68, %69 : vector<2x64xf32>
    %71 = math.tanh %70 : vector<2x64xf32>
    %72 = arith.mulf %67, %71 : vector<2x64xf32>
    %73 = vector.extract_strided_slice %6 {offsets = [4, 0], sizes = [2, 256], strides = [1, 1]} : vector<16x256xf32> to vector<2x256xf32>
    %74 = vector.extract_strided_slice %7 {offsets = [10, 0], sizes = [2, 256], strides = [1, 1]} : vector<16x256xf32> to vector<2x256xf32>
    %75 = arith.addf %73, %74 : vector<2x256xf32>
    %cst_21 = arith.constant dense<0.000000e+00> : vector<2x256xf32>
    %76 = tpu.matmul %72, %9, %cst_21 {dimension_numbers = #tpu.dot_dimension_numbers<[1], [0], [0], [1], [0, 0, 1, 1], [], []>} : vector<2x64xf32>, vector<64x256xf32>, vector<2x256xf32> -> vector<2x256xf32>
    %77 = arith.addf %75, %76 : vector<2x256xf32>
    %78 = arith.mulf %19, %77 : vector<2x256xf32>
    %79 = math.tanh %78 : vector<2x256xf32>
    %80 = arith.mulf %19, %79 : vector<2x256xf32>
    %81 = arith.addf %80, %22 : vector<2x256xf32>
    %82 = vector.extract_strided_slice %81 {offsets = [0, 0], sizes = [2, 64], strides = [1, 1]} : vector<2x256xf32> to vector<2x64xf32>
    %83 = vector.extract_strided_slice %81 {offsets = [0, 64], sizes = [2, 64], strides = [1, 1]} : vector<2x256xf32> to vector<2x64xf32>
    %84 = vector.extract_strided_slice %81 {offsets = [0, 128], sizes = [2, 64], strides = [1, 1]} : vector<2x256xf32> to vector<2x64xf32>
    %85 = vector.extract_strided_slice %81 {offsets = [0, 192], sizes = [2, 64], strides = [1, 1]} : vector<2x256xf32> to vector<2x64xf32>
    %86 = arith.mulf %83, %70 : vector<2x64xf32>
    %87 = arith.mulf %82, %84 : vector<2x64xf32>
    %88 = arith.addf %86, %87 : vector<2x64xf32>
    %89 = math.tanh %88 : vector<2x64xf32>
    %90 = arith.mulf %85, %89 : vector<2x64xf32>
    %91 = vector.extract_strided_slice %6 {offsets = [6, 0], sizes = [2, 256], strides = [1, 1]} : vector<16x256xf32> to vector<2x256xf32>
    %92 = vector.extract_strided_slice %7 {offsets = [8, 0], sizes = [2, 256], strides = [1, 1]} : vector<16x256xf32> to vector<2x256xf32>
    %93 = arith.addf %91, %92 : vector<2x256xf32>
    %cst_22 = arith.constant dense<0.000000e+00> : vector<2x256xf32>
    %94 = tpu.matmul %90, %9, %cst_22 {dimension_numbers = #tpu.dot_dimension_numbers<[1], [0], [0], [1], [0, 0, 1, 1], [], []>} : vector<2x64xf32>, vector<64x256xf32>, vector<2x256xf32> -> vector<2x256xf32>
    %95 = arith.addf %93, %94 : vector<2x256xf32>
    %96 = arith.mulf %19, %95 : vector<2x256xf32>
    %97 = math.tanh %96 : vector<2x256xf32>
    %98 = arith.mulf %19, %97 : vector<2x256xf32>
    %99 = arith.addf %98, %22 : vector<2x256xf32>
    %100 = vector.extract_strided_slice %99 {offsets = [0, 0], sizes = [2, 64], strides = [1, 1]} : vector<2x256xf32> to vector<2x64xf32>
    %101 = vector.extract_strided_slice %99 {offsets = [0, 64], sizes = [2, 64], strides = [1, 1]} : vector<2x256xf32> to vector<2x64xf32>
    %102 = vector.extract_strided_slice %99 {offsets = [0, 128], sizes = [2, 64], strides = [1, 1]} : vector<2x256xf32> to vector<2x64xf32>
    %103 = vector.extract_strided_slice %99 {offsets = [0, 192], sizes = [2, 64], strides = [1, 1]} : vector<2x256xf32> to vector<2x64xf32>
    %104 = arith.mulf %101, %88 : vector<2x64xf32>
    %105 = arith.mulf %100, %102 : vector<2x64xf32>
    %106 = arith.addf %104, %105 : vector<2x64xf32>
    %107 = math.tanh %106 : vector<2x64xf32>
    %108 = arith.mulf %103, %107 : vector<2x64xf32>
    %109 = vector.extract_strided_slice %6 {offsets = [8, 0], sizes = [2, 256], strides = [1, 1]} : vector<16x256xf32> to vector<2x256xf32>
    %110 = vector.extract_strided_slice %7 {offsets = [6, 0], sizes = [2, 256], strides = [1, 1]} : vector<16x256xf32> to vector<2x256xf32>
    %111 = arith.addf %109, %110 : vector<2x256xf32>
    %cst_23 = arith.constant dense<0.000000e+00> : vector<2x256xf32>
    %112 = tpu.matmul %108, %9, %cst_23 {dimension_numbers = #tpu.dot_dimension_numbers<[1], [0], [0], [1], [0, 0, 1, 1], [], []>} : vector<2x64xf32>, vector<64x256xf32>, vector<2x256xf32> -> vector<2x256xf32>
    %113 = arith.addf %111, %112 : vector<2x256xf32>
    %114 = arith.mulf %19, %113 : vector<2x256xf32>
    %115 = math.tanh %114 : vector<2x256xf32>
    %116 = arith.mulf %19, %115 : vector<2x256xf32>
    %117 = arith.addf %116, %22 : vector<2x256xf32>
    %118 = vector.extract_strided_slice %117 {offsets = [0, 0], sizes = [2, 64], strides = [1, 1]} : vector<2x256xf32> to vector<2x64xf32>
    %119 = vector.extract_strided_slice %117 {offsets = [0, 64], sizes = [2, 64], strides = [1, 1]} : vector<2x256xf32> to vector<2x64xf32>
    %120 = vector.extract_strided_slice %117 {offsets = [0, 128], sizes = [2, 64], strides = [1, 1]} : vector<2x256xf32> to vector<2x64xf32>
    %121 = vector.extract_strided_slice %117 {offsets = [0, 192], sizes = [2, 64], strides = [1, 1]} : vector<2x256xf32> to vector<2x64xf32>
    %122 = arith.mulf %119, %106 : vector<2x64xf32>
    %123 = arith.mulf %118, %120 : vector<2x64xf32>
    %124 = arith.addf %122, %123 : vector<2x64xf32>
    %125 = math.tanh %124 : vector<2x64xf32>
    %126 = arith.mulf %121, %125 : vector<2x64xf32>
    %127 = vector.extract_strided_slice %6 {offsets = [10, 0], sizes = [2, 256], strides = [1, 1]} : vector<16x256xf32> to vector<2x256xf32>
    %128 = vector.extract_strided_slice %7 {offsets = [4, 0], sizes = [2, 256], strides = [1, 1]} : vector<16x256xf32> to vector<2x256xf32>
    %129 = arith.addf %127, %128 : vector<2x256xf32>
    %cst_24 = arith.constant dense<0.000000e+00> : vector<2x256xf32>
    %130 = tpu.matmul %126, %9, %cst_24 {dimension_numbers = #tpu.dot_dimension_numbers<[1], [0], [0], [1], [0, 0, 1, 1], [], []>} : vector<2x64xf32>, vector<64x256xf32>, vector<2x256xf32> -> vector<2x256xf32>
    %131 = arith.addf %129, %130 : vector<2x256xf32>
    %132 = arith.mulf %19, %131 : vector<2x256xf32>
    %133 = math.tanh %132 : vector<2x256xf32>
    %134 = arith.mulf %19, %133 : vector<2x256xf32>
    %135 = arith.addf %134, %22 : vector<2x256xf32>
    %136 = vector.extract_strided_slice %135 {offsets = [0, 0], sizes = [2, 64], strides = [1, 1]} : vector<2x256xf32> to vector<2x64xf32>
    %137 = vector.extract_strided_slice %135 {offsets = [0, 64], sizes = [2, 64], strides = [1, 1]} : vector<2x256xf32> to vector<2x64xf32>
    %138 = vector.extract_strided_slice %135 {offsets = [0, 128], sizes = [2, 64], strides = [1, 1]} : vector<2x256xf32> to vector<2x64xf32>
    %139 = vector.extract_strided_slice %135 {offsets = [0, 192], sizes = [2, 64], strides = [1, 1]} : vector<2x256xf32> to vector<2x64xf32>
    %140 = arith.mulf %137, %124 : vector<2x64xf32>
    %141 = arith.mulf %136, %138 : vector<2x64xf32>
    %142 = arith.addf %140, %141 : vector<2x64xf32>
    %143 = math.tanh %142 : vector<2x64xf32>
    %144 = arith.mulf %139, %143 : vector<2x64xf32>
    %145 = vector.extract_strided_slice %6 {offsets = [12, 0], sizes = [2, 256], strides = [1, 1]} : vector<16x256xf32> to vector<2x256xf32>
    %146 = vector.extract_strided_slice %7 {offsets = [2, 0], sizes = [2, 256], strides = [1, 1]} : vector<16x256xf32> to vector<2x256xf32>
    %147 = arith.addf %145, %146 : vector<2x256xf32>
    %cst_25 = arith.constant dense<0.000000e+00> : vector<2x256xf32>
    %148 = tpu.matmul %144, %9, %cst_25 {dimension_numbers = #tpu.dot_dimension_numbers<[1], [0], [0], [1], [0, 0, 1, 1], [], []>} : vector<2x64xf32>, vector<64x256xf32>, vector<2x256xf32> -> vector<2x256xf32>
    %149 = arith.addf %147, %148 : vector<2x256xf32>
    %150 = arith.mulf %19, %149 : vector<2x256xf32>
    %151 = math.tanh %150 : vector<2x256xf32>
    %152 = arith.mulf %19, %151 : vector<2x256xf32>
    %153 = arith.addf %152, %22 : vector<2x256xf32>
    %154 = vector.extract_strided_slice %153 {offsets = [0, 0], sizes = [2, 64], strides = [1, 1]} : vector<2x256xf32> to vector<2x64xf32>
    %155 = vector.extract_strided_slice %153 {offsets = [0, 64], sizes = [2, 64], strides = [1, 1]} : vector<2x256xf32> to vector<2x64xf32>
    %156 = vector.extract_strided_slice %153 {offsets = [0, 128], sizes = [2, 64], strides = [1, 1]} : vector<2x256xf32> to vector<2x64xf32>
    %157 = vector.extract_strided_slice %153 {offsets = [0, 192], sizes = [2, 64], strides = [1, 1]} : vector<2x256xf32> to vector<2x64xf32>
    %158 = arith.mulf %155, %142 : vector<2x64xf32>
    %159 = arith.mulf %154, %156 : vector<2x64xf32>
    %160 = arith.addf %158, %159 : vector<2x64xf32>
    %161 = math.tanh %160 : vector<2x64xf32>
    %162 = arith.mulf %157, %161 : vector<2x64xf32>
    %163 = vector.extract_strided_slice %6 {offsets = [14, 0], sizes = [2, 256], strides = [1, 1]} : vector<16x256xf32> to vector<2x256xf32>
    %164 = vector.extract_strided_slice %7 {offsets = [0, 0], sizes = [2, 256], strides = [1, 1]} : vector<16x256xf32> to vector<2x256xf32>
    %165 = arith.addf %163, %164 : vector<2x256xf32>
    %cst_26 = arith.constant dense<0.000000e+00> : vector<2x256xf32>
    %166 = tpu.matmul %162, %9, %cst_26 {dimension_numbers = #tpu.dot_dimension_numbers<[1], [0], [0], [1], [0, 0, 1, 1], [], []>} : vector<2x64xf32>, vector<64x256xf32>, vector<2x256xf32> -> vector<2x256xf32>
    %167 = arith.addf %165, %166 : vector<2x256xf32>
    %168 = arith.mulf %19, %167 : vector<2x256xf32>
    %169 = math.tanh %168 : vector<2x256xf32>
    %170 = arith.mulf %19, %169 : vector<2x256xf32>
    %171 = arith.addf %170, %22 : vector<2x256xf32>
    %172 = vector.extract_strided_slice %171 {offsets = [0, 0], sizes = [2, 64], strides = [1, 1]} : vector<2x256xf32> to vector<2x64xf32>
    %173 = vector.extract_strided_slice %171 {offsets = [0, 64], sizes = [2, 64], strides = [1, 1]} : vector<2x256xf32> to vector<2x64xf32>
    %174 = vector.extract_strided_slice %171 {offsets = [0, 128], sizes = [2, 64], strides = [1, 1]} : vector<2x256xf32> to vector<2x64xf32>
    %175 = vector.extract_strided_slice %171 {offsets = [0, 192], sizes = [2, 64], strides = [1, 1]} : vector<2x256xf32> to vector<2x64xf32>
    %176 = arith.mulf %173, %160 : vector<2x64xf32>
    %177 = arith.mulf %172, %174 : vector<2x64xf32>
    %178 = arith.addf %176, %177 : vector<2x64xf32>
    %179 = math.tanh %178 : vector<2x64xf32>
    %180 = arith.mulf %175, %179 : vector<2x64xf32>
    %c0_27 = arith.constant 0 : index
    %c0_28 = arith.constant 0 : index
    %181 = vector.load %arg6[%c0_27, %c0_28] : memref<64x32xf32, #tpu.memory_space<vmem>>, vector<64x32xf32>
    %cst_29 = arith.constant dense<0.000000e+00> : vector<2x32xf32>
    %182 = tpu.matmul %180, %181, %cst_29 {dimension_numbers = #tpu.dot_dimension_numbers<[1], [0], [0], [1], [0, 0, 1, 1], [], []>} : vector<2x64xf32>, vector<64x32xf32>, vector<2x32xf32> -> vector<2x32xf32>
    %c0_30 = arith.constant 0 : index
    %c0_31 = arith.constant 0 : index
    %183 = vector.load %arg9[%c0_30, %c0_31] : memref<1x192xf32, #tpu.memory_space<vmem>>, vector<1x32xf32>
    %184 = vector.broadcast %183 : vector<1x32xf32> to vector<2x32xf32>
    %185 = arith.addf %182, %184 : vector<2x32xf32>
    %186 = vector.extract_strided_slice %185 {offsets = [0, 0], sizes = [2, 16], strides = [1, 1]} : vector<2x32xf32> to vector<2x16xf32>
    %187 = vector.extract_strided_slice %185 {offsets = [0, 16], sizes = [2, 16], strides = [1, 1]} : vector<2x32xf32> to vector<2x16xf32>
    %cst_32 = arith.constant 5.000000e-01 : f32
    %188 = vector.broadcast %cst_32 : f32 to vector<2x16xf32>
    %189 = arith.mulf %188, %187 : vector<2x16xf32>
    %190 = math.exp %189 : vector<2x16xf32>
    %c0_33 = arith.constant 0 : index
    %c0_34 = arith.constant 0 : index
    %191 = vector.load %arg1[%c0_33, %c0_34] : memref<2x16xf32, #tpu.memory_space<vmem>>, vector<2x16xf32>
    %192 = arith.mulf %190, %191 : vector<2x16xf32>
    %193 = arith.addf %192, %186 : vector<2x16xf32>
    %194 = tpu.concatenate %186, %187, %193 in 1 : vector<2x16xf32>, vector<2x16xf32>, vector<2x16xf32> -> vector<2x48xf32>
    %c0_35 = arith.constant 0 : index
    %c0_36 = arith.constant 0 : index
    %195 = vector.load %arg10[%c0_35, %c0_36] : memref<2x48xf32, #tpu.memory_space<vmem>>, vector<2x48xf32>
    tpu.vector_store %arg10[%c0_35, %c0_36], %194 {strides = array<i32>} : memref<2x48xf32, #tpu.memory_space<vmem>>, vector<2x48xf32>,
    %c0_37 = arith.constant 0 : index
    %c0_38 = arith.constant 0 : index
    %196 = vector.load %arg7[%c0_37, %c0_38] : memref<16x32xf32, #tpu.memory_space<vmem>>, vector<16x32xf32>
    %cst_39 = arith.constant dense<0.000000e+00> : vector<2x32xf32>
    %197 = tpu.matmul %193, %196, %cst_39 {dimension_numbers = #tpu.dot_dimension_numbers<[1], [0], [0], [1], [0, 0, 1, 1], [], []>} : vector<2x16xf32>, vector<16x32xf32>, vector<2x32xf32> -> vector<2x32xf32>
    %c0_40 = arith.constant 0 : index
    %c32 = arith.constant 32 : index
    %198 = vector.load %arg9[%c0_40, %c32] : memref<1x192xf32, #tpu.memory_space<vmem>>, vector<1x32xf32>
    %199 = vector.broadcast %198 : vector<1x32xf32> to vector<2x32xf32>
    %200 = arith.addf %197, %199 : vector<2x32xf32>
    %201 = math.tanh %200 : vector<2x32xf32>
    %cst_41 = arith.constant 0.000000e+00 : f32
    %202 = vector.broadcast %cst_41 : f32 to vector<2x32xf32>
    %cst_42 = arith.constant 0.000000e+00 : f32
    %203 = vector.broadcast %cst_42 : f32 to vector<2x128xf32>
    %c0_43 = arith.constant 0 : index
    %c512 = arith.constant 512 : index
    %204 = vector.load %arg3[%c0_43, %c512] : memref<1x640xf32, #tpu.memory_space<vmem>>, vector<1x128xf32>
    %205 = vector.broadcast %204 : vector<1x128xf32> to vector<2x128xf32>
    %206 = arith.addf %203, %205 : vector<2x128xf32>
    %cst_44 = arith.constant dense<0.000000e+00> : vector<2x128xf32>
    %207 = tpu.matmul %201, %10, %cst_44 {dimension_numbers = #tpu.dot_dimension_numbers<[1], [0], [0], [1], [0, 0, 1, 1], [], []>} : vector<2x32xf32>, vector<32x128xf32>, vector<2x128xf32> -> vector<2x128xf32>
    %208 = arith.addf %206, %207 : vector<2x128xf32>
    %209 = arith.mulf %31, %208 : vector<2x128xf32>
    %210 = math.tanh %209 : vector<2x128xf32>
    %211 = arith.mulf %31, %210 : vector<2x128xf32>
    %212 = arith.addf %211, %34 : vector<2x128xf32>
    %213 = vector.extract_strided_slice %212 {offsets = [0, 0], sizes = [2, 32], strides = [1, 1]} : vector<2x128xf32> to vector<2x32xf32>
    %214 = vector.extract_strided_slice %212 {offsets = [0, 32], sizes = [2, 32], strides = [1, 1]} : vector<2x128xf32> to vector<2x32xf32>
    %215 = vector.extract_strided_slice %212 {offsets = [0, 64], sizes = [2, 32], strides = [1, 1]} : vector<2x128xf32> to vector<2x32xf32>
    %216 = vector.extract_strided_slice %212 {offsets = [0, 96], sizes = [2, 32], strides = [1, 1]} : vector<2x128xf32> to vector<2x32xf32>
    %217 = arith.mulf %214, %202 : vector<2x32xf32>
    %218 = arith.mulf %213, %215 : vector<2x32xf32>
    %219 = arith.addf %217, %218 : vector<2x32xf32>
    %220 = math.tanh %219 : vector<2x32xf32>
    %221 = arith.mulf %216, %220 : vector<2x32xf32>
    %222 = vector.extract_strided_slice %8 {offsets = [0, 0], sizes = [2, 128], strides = [1, 1]} : vector<16x128xf32> to vector<2x128xf32>
    %cst_45 = arith.constant dense<0.000000e+00> : vector<2x128xf32>
    %223 = tpu.matmul %221, %10, %cst_45 {dimension_numbers = #tpu.dot_dimension_numbers<[1], [0], [0], [1], [0, 0, 1, 1], [], []>} : vector<2x32xf32>, vector<32x128xf32>, vector<2x128xf32> -> vector<2x128xf32>
    %224 = arith.addf %222, %223 : vector<2x128xf32>
    %225 = arith.mulf %31, %224 : vector<2x128xf32>
    %226 = math.tanh %225 : vector<2x128xf32>
    %227 = arith.mulf %31, %226 : vector<2x128xf32>
    %228 = arith.addf %227, %34 : vector<2x128xf32>
    %229 = vector.extract_strided_slice %228 {offsets = [0, 0], sizes = [2, 32], strides = [1, 1]} : vector<2x128xf32> to vector<2x32xf32>
    %230 = vector.extract_strided_slice %228 {offsets = [0, 32], sizes = [2, 32], strides = [1, 1]} : vector<2x128xf32> to vector<2x32xf32>
    %231 = vector.extract_strided_slice %228 {offsets = [0, 64], sizes = [2, 32], strides = [1, 1]} : vector<2x128xf32> to vector<2x32xf32>
    %232 = vector.extract_strided_slice %228 {offsets = [0, 96], sizes = [2, 32], strides = [1, 1]} : vector<2x128xf32> to vector<2x32xf32>
    %233 = arith.mulf %230, %219 : vector<2x32xf32>
    %234 = arith.mulf %229, %231 : vector<2x32xf32>
    %235 = arith.addf %233, %234 : vector<2x32xf32>
    %236 = math.tanh %235 : vector<2x32xf32>
    %237 = arith.mulf %232, %236 : vector<2x32xf32>
    %238 = vector.extract_strided_slice %8 {offsets = [2, 0], sizes = [2, 128], strides = [1, 1]} : vector<16x128xf32> to vector<2x128xf32>
    %cst_46 = arith.constant dense<0.000000e+00> : vector<2x128xf32>
    %239 = tpu.matmul %237, %10, %cst_46 {dimension_numbers = #tpu.dot_dimension_numbers<[1], [0], [0], [1], [0, 0, 1, 1], [], []>} : vector<2x32xf32>, vector<32x128xf32>, vector<2x128xf32> -> vector<2x128xf32>
    %240 = arith.addf %238, %239 : vector<2x128xf32>
    %241 = arith.mulf %31, %240 : vector<2x128xf32>
    %242 = math.tanh %241 : vector<2x128xf32>
    %243 = arith.mulf %31, %242 : vector<2x128xf32>
    %244 = arith.addf %243, %34 : vector<2x128xf32>
    %245 = vector.extract_strided_slice %244 {offsets = [0, 0], sizes = [2, 32], strides = [1, 1]} : vector<2x128xf32> to vector<2x32xf32>
    %246 = vector.extract_strided_slice %244 {offsets = [0, 32], sizes = [2, 32], strides = [1, 1]} : vector<2x128xf32> to vector<2x32xf32>
    %247 = vector.extract_strided_slice %244 {offsets = [0, 64], sizes = [2, 32], strides = [1, 1]} : vector<2x128xf32> to vector<2x32xf32>
    %248 = vector.extract_strided_slice %244 {offsets = [0, 96], sizes = [2, 32], strides = [1, 1]} : vector<2x128xf32> to vector<2x32xf32>
    %249 = arith.mulf %246, %235 : vector<2x32xf32>
    %250 = arith.mulf %245, %247 : vector<2x32xf32>
    %251 = arith.addf %249, %250 : vector<2x32xf32>
    %252 = math.tanh %251 : vector<2x32xf32>
    %253 = arith.mulf %248, %252 : vector<2x32xf32>
    %254 = vector.extract_strided_slice %8 {offsets = [4, 0], sizes = [2, 128], strides = [1, 1]} : vector<16x128xf32> to vector<2x128xf32>
    %cst_47 = arith.constant dense<0.000000e+00> : vector<2x128xf32>
    %255 = tpu.matmul %253, %10, %cst_47 {dimension_numbers = #tpu.dot_dimension_numbers<[1], [0], [0], [1], [0, 0, 1, 1], [], []>} : vector<2x32xf32>, vector<32x128xf32>, vector<2x128xf32> -> vector<2x128xf32>
    %256 = arith.addf %254, %255 : vector<2x128xf32>
    %257 = arith.mulf %31, %256 : vector<2x128xf32>
    %258 = math.tanh %257 : vector<2x128xf32>
    %259 = arith.mulf %31, %258 : vector<2x128xf32>
    %260 = arith.addf %259, %34 : vector<2x128xf32>
    %261 = vector.extract_strided_slice %260 {offsets = [0, 0], sizes = [2, 32], strides = [1, 1]} : vector<2x128xf32> to vector<2x32xf32>
    %262 = vector.extract_strided_slice %260 {offsets = [0, 32], sizes = [2, 32], strides = [1, 1]} : vector<2x128xf32> to vector<2x32xf32>
    %263 = vector.extract_strided_slice %260 {offsets = [0, 64], sizes = [2, 32], strides = [1, 1]} : vector<2x128xf32> to vector<2x32xf32>
    %264 = vector.extract_strided_slice %260 {offsets = [0, 96], sizes = [2, 32], strides = [1, 1]} : vector<2x128xf32> to vector<2x32xf32>
    %265 = arith.mulf %262, %251 : vector<2x32xf32>
    %266 = arith.mulf %261, %263 : vector<2x32xf32>
    %267 = arith.addf %265, %266 : vector<2x32xf32>
    %268 = math.tanh %267 : vector<2x32xf32>
    %269 = arith.mulf %264, %268 : vector<2x32xf32>
    %270 = vector.extract_strided_slice %8 {offsets = [6, 0], sizes = [2, 128], strides = [1, 1]} : vector<16x128xf32> to vector<2x128xf32>
    %cst_48 = arith.constant dense<0.000000e+00> : vector<2x128xf32>
    %271 = tpu.matmul %269, %10, %cst_48 {dimension_numbers = #tpu.dot_dimension_numbers<[1], [0], [0], [1], [0, 0, 1, 1], [], []>} : vector<2x32xf32>, vector<32x128xf32>, vector<2x128xf32> -> vector<2x128xf32>
    %272 = arith.addf %270, %271 : vector<2x128xf32>
    %273 = arith.mulf %31, %272 : vector<2x128xf32>
    %274 = math.tanh %273 : vector<2x128xf32>
    %275 = arith.mulf %31, %274 : vector<2x128xf32>
    %276 = arith.addf %275, %34 : vector<2x128xf32>
    %277 = vector.extract_strided_slice %276 {offsets = [0, 0], sizes = [2, 32], strides = [1, 1]} : vector<2x128xf32> to vector<2x32xf32>
    %278 = vector.extract_strided_slice %276 {offsets = [0, 32], sizes = [2, 32], strides = [1, 1]} : vector<2x128xf32> to vector<2x32xf32>
    %279 = vector.extract_strided_slice %276 {offsets = [0, 64], sizes = [2, 32], strides = [1, 1]} : vector<2x128xf32> to vector<2x32xf32>
    %280 = vector.extract_strided_slice %276 {offsets = [0, 96], sizes = [2, 32], strides = [1, 1]} : vector<2x128xf32> to vector<2x32xf32>
    %281 = arith.mulf %278, %267 : vector<2x32xf32>
    %282 = arith.mulf %277, %279 : vector<2x32xf32>
    %283 = arith.addf %281, %282 : vector<2x32xf32>
    %284 = math.tanh %283 : vector<2x32xf32>
    %285 = arith.mulf %280, %284 : vector<2x32xf32>
    %286 = vector.extract_strided_slice %8 {offsets = [8, 0], sizes = [2, 128], strides = [1, 1]} : vector<16x128xf32> to vector<2x128xf32>
    %cst_49 = arith.constant dense<0.000000e+00> : vector<2x128xf32>
    %287 = tpu.matmul %285, %10, %cst_49 {dimension_numbers = #tpu.dot_dimension_numbers<[1], [0], [0], [1], [0, 0, 1, 1], [], []>} : vector<2x32xf32>, vector<32x128xf32>, vector<2x128xf32> -> vector<2x128xf32>
    %288 = arith.addf %286, %287 : vector<2x128xf32>
    %289 = arith.mulf %31, %288 : vector<2x128xf32>
    %290 = math.tanh %289 : vector<2x128xf32>
    %291 = arith.mulf %31, %290 : vector<2x128xf32>
    %292 = arith.addf %291, %34 : vector<2x128xf32>
    %293 = vector.extract_strided_slice %292 {offsets = [0, 0], sizes = [2, 32], strides = [1, 1]} : vector<2x128xf32> to vector<2x32xf32>
    %294 = vector.extract_strided_slice %292 {offsets = [0, 32], sizes = [2, 32], strides = [1, 1]} : vector<2x128xf32> to vector<2x32xf32>
    %295 = vector.extract_strided_slice %292 {offsets = [0, 64], sizes = [2, 32], strides = [1, 1]} : vector<2x128xf32> to vector<2x32xf32>
    %296 = vector.extract_strided_slice %292 {offsets = [0, 96], sizes = [2, 32], strides = [1, 1]} : vector<2x128xf32> to vector<2x32xf32>
    %297 = arith.mulf %294, %283 : vector<2x32xf32>
    %298 = arith.mulf %293, %295 : vector<2x32xf32>
    %299 = arith.addf %297, %298 : vector<2x32xf32>
    %300 = math.tanh %299 : vector<2x32xf32>
    %301 = arith.mulf %296, %300 : vector<2x32xf32>
    %302 = vector.extract_strided_slice %8 {offsets = [10, 0], sizes = [2, 128], strides = [1, 1]} : vector<16x128xf32> to vector<2x128xf32>
    %cst_50 = arith.constant dense<0.000000e+00> : vector<2x128xf32>
    %303 = tpu.matmul %301, %10, %cst_50 {dimension_numbers = #tpu.dot_dimension_numbers<[1], [0], [0], [1], [0, 0, 1, 1], [], []>} : vector<2x32xf32>, vector<32x128xf32>, vector<2x128xf32> -> vector<2x128xf32>
    %304 = arith.addf %302, %303 : vector<2x128xf32>
    %305 = arith.mulf %31, %304 : vector<2x128xf32>
    %306 = math.tanh %305 : vector<2x128xf32>
    %307 = arith.mulf %31, %306 : vector<2x128xf32>
    %308 = arith.addf %307, %34 : vector<2x128xf32>
    %309 = vector.extract_strided_slice %308 {offsets = [0, 0], sizes = [2, 32], strides = [1, 1]} : vector<2x128xf32> to vector<2x32xf32>
    %310 = vector.extract_strided_slice %308 {offsets = [0, 32], sizes = [2, 32], strides = [1, 1]} : vector<2x128xf32> to vector<2x32xf32>
    %311 = vector.extract_strided_slice %308 {offsets = [0, 64], sizes = [2, 32], strides = [1, 1]} : vector<2x128xf32> to vector<2x32xf32>
    %312 = vector.extract_strided_slice %308 {offsets = [0, 96], sizes = [2, 32], strides = [1, 1]} : vector<2x128xf32> to vector<2x32xf32>
    %313 = arith.mulf %310, %299 : vector<2x32xf32>
    %314 = arith.mulf %309, %311 : vector<2x32xf32>
    %315 = arith.addf %313, %314 : vector<2x32xf32>
    %316 = math.tanh %315 : vector<2x32xf32>
    %317 = arith.mulf %312, %316 : vector<2x32xf32>
    %318 = vector.extract_strided_slice %8 {offsets = [12, 0], sizes = [2, 128], strides = [1, 1]} : vector<16x128xf32> to vector<2x128xf32>
    %cst_51 = arith.constant dense<0.000000e+00> : vector<2x128xf32>
    %319 = tpu.matmul %317, %10, %cst_51 {dimension_numbers = #tpu.dot_dimension_numbers<[1], [0], [0], [1], [0, 0, 1, 1], [], []>} : vector<2x32xf32>, vector<32x128xf32>, vector<2x128xf32> -> vector<2x128xf32>
    %320 = arith.addf %318, %319 : vector<2x128xf32>
    %321 = arith.mulf %31, %320 : vector<2x128xf32>
    %322 = math.tanh %321 : vector<2x128xf32>
    %323 = arith.mulf %31, %322 : vector<2x128xf32>
    %324 = arith.addf %323, %34 : vector<2x128xf32>
    %325 = vector.extract_strided_slice %324 {offsets = [0, 0], sizes = [2, 32], strides = [1, 1]} : vector<2x128xf32> to vector<2x32xf32>
    %326 = vector.extract_strided_slice %324 {offsets = [0, 32], sizes = [2, 32], strides = [1, 1]} : vector<2x128xf32> to vector<2x32xf32>
    %327 = vector.extract_strided_slice %324 {offsets = [0, 64], sizes = [2, 32], strides = [1, 1]} : vector<2x128xf32> to vector<2x32xf32>
    %328 = vector.extract_strided_slice %324 {offsets = [0, 96], sizes = [2, 32], strides = [1, 1]} : vector<2x128xf32> to vector<2x32xf32>
    %329 = arith.mulf %326, %315 : vector<2x32xf32>
    %330 = arith.mulf %325, %327 : vector<2x32xf32>
    %331 = arith.addf %329, %330 : vector<2x32xf32>
    %332 = math.tanh %331 : vector<2x32xf32>
    %333 = arith.mulf %328, %332 : vector<2x32xf32>
    %334 = tpu.concatenate %221, %237, %253, %269, %285, %301, %317, %333 in 1 : vector<2x32xf32>, vector<2x32xf32>, vector<2x32xf32>, vector<2x32xf32>, vector<2x32xf32>, vector<2x32xf32>, vector<2x32xf32>, vector<2x32xf32> -> vector<2x256xf32>
    %c0_52 = arith.constant 0 : index
    %c0_53 = arith.constant 0 : index
    %335 = vector.load %arg8[%c0_52, %c0_53] : memref<256x128xf32, #tpu.memory_space<vmem>>, vector<256x128xf32>
    %cst_54 = arith.constant dense<0.000000e+00> : vector<2x128xf32>
    %336 = tpu.matmul %334, %335, %cst_54 {dimension_numbers = #tpu.dot_dimension_numbers<[1], [0], [0], [1], [0, 0, 1, 1], [], []>} : vector<2x256xf32>, vector<256x128xf32>, vector<2x128xf32> -> vector<2x128xf32>
    %c0_55 = arith.constant 0 : index
    %c64 = arith.constant 64 : index
    %337 = vector.load %arg9[%c0_55, %c64] : memref<1x192xf32, #tpu.memory_space<vmem>>, vector<1x128xf32>
    %338 = vector.broadcast %337 : vector<1x128xf32> to vector<2x128xf32>
    %339 = arith.addf %336, %338 : vector<2x128xf32>
    %c0_56 = arith.constant 0 : index
    %c0_57 = arith.constant 0 : index
    %340 = vector.load %arg11[%c0_56, %c0_57] : memref<2x128xf32, #tpu.memory_space<vmem>>, vector<2x128xf32>
    tpu.vector_store %arg11[%c0_56, %c0_57], %339 {strides = array<i32>} : memref<2x128xf32, #tpu.memory_space<vmem>>, vector<2x128xf32>,
    return
  }
}

</mosaic_0001>

<llo_original>
// kernel: vae_forward.1
$region0: #{vae_forward.1}
  #allocation0 [shape = 'u32[]', space=smem, size = 0x4, offset = 0x4, fixed_abs, tag = 'smem constant byte address 0x4 - core index']
  #allocation1 [shape = 'u32[144,128]{1,0:T(1,128)}', space=vmem, size = 0x12000, scoped, tag = 'internal scratch']
  %s0 = inlined_call_operand.vmem [shape: f32[16,16], index: 0, kind: input, shape index: {}]
  %s1 = inlined_call_operand.vmem [shape: f32[2,16], index: 1, kind: input, shape index: {}]
  %s2 = inlined_call_operand.hbm [shape: f32[16,640], index: 2, kind: input, shape index: {}]
  %s3 = inlined_call_operand.hbm [shape: f32[1,640], index: 3, kind: input, shape index: {}]
  %s4 = inlined_call_operand.vmem [shape: f32[64,256], index: 4, kind: input, shape index: {}]
  %s5 = inlined_call_operand.hbm [shape: f32[32,128], index: 5, kind: input, shape index: {}]
  %s6 = inlined_call_operand.vmem [shape: f32[64,32], index: 6, kind: input, shape index: {}]
  %s7 = inlined_call_operand.hbm [shape: f32[16,32], index: 7, kind: input, shape index: {}]
  %s8 = inlined_call_operand.hbm [shape: f32[256,128], index: 8, kind: input, shape index: {}]
  %s9 = inlined_call_operand.hbm [shape: f32[1,192], index: 9, kind: input, shape index: {}]
  %s10 = inlined_call_operand.vmem [shape: f32[2,48], index: 10, kind: output, shape index: {0}]
  %s11 = inlined_call_operand.vmem [shape: f32[2,128], index: 11, kind: output, shape index: {1}]
  %12 = xla_tuple %s10, %s11
  %s13 = sld [smem:[#allocation0]]
  $region82: #{vae_forward.1} parent=0
    _
  %s15 = ssub.s32 1, %s13
  %s16 = scalar_select 0, %s15, %s13
  $region1: #{vae_forward.1} parent=0
    #allocation2 [shape = 'u8[40960]{0}', space=vmem, size = 0xa000, scoped, tag = 'input window, operand 2, single buffered']
    #allocation3 [shape = 's32[1]{0}', space=sflag, size = 0x4, scoped, tag = 'scoped memory for vae_forward.1']
    #allocation4 [shape = 'u8[2560]{0}', space=vmem, size = 0xc00, scoped, tag = 'input window, operand 3, single buffered']
    #allocation5 [shape = 's32[1]{0}', space=sflag, size = 0x4, scoped, tag = 'scoped memory for vae_forward.1']
    #allocation6 [shape = 'u8[16384]{0}', space=vmem, size = 0x4000, scoped, tag = 'input window, operand 5, single buffered']
    #allocation7 [shape = 'u8[8192]{0}', space=vmem, size = 0x2000, scoped, tag = 'input window, operand 7, single buffered']
    #allocation8 [shape = 's32[1]{0}', space=sflag, size = 0x4, scoped, tag = 'scoped memory for vae_forward.1']
    #allocation9 [shape = 'u8[131072]{0}', space=vmem, size = 0x20000, scoped, tag = 'input window, operand 8, single buffered']
    #allocation10 [shape = 'u8[1024]{0}', space=vmem, size = 0x400, scoped, tag = 'input window, operand 9, single buffered']
    #allocation11 [shape = 's32[1]{0}', space=sflag, size = 0x4, scoped, tag = 'scoped memory for vae_forward.1']
    %17 = vsyncpa [#allocation3], 0
    %18 = vsyncpa [#allocation5], 0
    %19 = vsyncpa [#allocation8], 0
    %20 = vsyncpa [#allocation11], 0
    // Predicated region
    $region2: #{vae_forward.1} parent=1 // pred_check
      _
    $region3: #{vae_forward.1} parent=1 // pred_check_branch
      %22 = sbr.rel (0) target = $region5
    $region4: #{vae_forward.1} parent=1 // pred_region
      _
    $region5: #{vae_forward.1} parent=1 // pred_fallthru
      _
    // Predicated region
    $region6: #{vae_forward.1} parent=1 // pred_check
      _
    $region7: #{vae_forward.1} parent=1 // pred_check_branch
      %24 = sbr.rel (0) target = $region9
    $region8: #{vae_forward.1} parent=1 // pred_region
      _
    $region9: #{vae_forward.1} parent=1 // pred_fallthru
      _
    // Predicated region
    $region10: #{vae_forward.1} parent=1 // pred_check
      _
    $region11: #{vae_forward.1} parent=1 // pred_check_branch
      %26 = sbr.rel (0) target = $region13
    $region12: #{vae_forward.1} parent=1 // pred_region
      %s28 = ssub.s32 1280, 1280
      %29 = vsyncadd [#allocation3], %s28
      %s30 = sshll.u32 [#allocation2], 4
      %s31 = int_to_ptr.vmem [resolvable:$true] %s30
      %36 = dma.hbm_to_vmem [thread:$0]  %s2, 1280, %s31, [#allocation3], 640, 640, 40
    $region13: #{vae_forward.1} parent=1 // pred_fallthru
      _
    // Predicated region
    $region14: #{vae_forward.1} parent=1 // pred_check
      _
    $region15: #{vae_forward.1} parent=1 // pred_check_branch
      %38 = sbr.rel (0) target = $region17
    $region16: #{vae_forward.1} parent=1 // pred_region
      %s40 = ssub.s32 80, 80
      %41 = vsyncadd [#allocation5], %s40
      %s43 = sshll.u32 [#allocation4], 4
      %s44 = int_to_ptr.vmem [resolvable:$true] %s43
      %46 = dma.hbm_to_vmem [thread:$0]  %s3, 80, %s44, [#allocation5]
    $region17: #{vae_forward.1} parent=1 // pred_fallthru
      _
    // Predicated region
    $region18: #{vae_forward.1} parent=1 // pred_check
      _
    $region19: #{vae_forward.1} parent=1 // pred_check_branch
      %48 = sbr.rel (0) target = $region21
    $region20: #{vae_forward.1} parent=1 // pred_region
      _
    $region21: #{vae_forward.1} parent=1 // pred_fallthru
      _
    // Predicated region
    $region22: #{vae_forward.1} parent=1 // pred_check
      _
    $region23: #{vae_forward.1} parent=1 // pred_check_branch
      %50 = sbr.rel (0) target = $region25
    $region24: #{vae_forward.1} parent=1 // pred_region
      %s52 = ssub.s32 512, 512
      %53 = vsyncadd [#allocation5], %s52
      %s54 = sshll.u32 [#allocation6], 4
      %s55 = int_to_ptr.vmem [resolvable:$true] %s54
      %60 = dma.hbm_to_vmem [thread:$0]  %s5, 512, %s55, [#allocation5], 128, 128, 8
    $region25: #{vae_forward.1} parent=1 // pred_fallthru
      _
    // Predicated region
    $region26: #{vae_forward.1} parent=1 // pred_check
      _
    $region27: #{vae_forward.1} parent=1 // pred_check_branch
      %62 = sbr.rel (0) target = $region29
    $region28: #{vae_forward.1} parent=1 // pred_region
      _
    $region29: #{vae_forward.1} parent=1 // pred_fallthru
      _
    // Predicated region
    $region30: #{vae_forward.1} parent=1 // pred_check
      _
    $region31: #{vae_forward.1} parent=1 // pred_check_branch
      %64 = sbr.rel (0) target = $region33
    $region32: #{vae_forward.1} parent=1 // pred_region
      %s66 = ssub.s32 256, 256
      %67 = vsyncadd [#allocation8], %s66
      %s68 = sshll.u32 [#allocation7], 4
      %s69 = int_to_ptr.vmem [resolvable:$true] %s68
      %74 = dma.hbm_to_vmem [thread:$0]  %s7, 256, %s69, [#allocation8], 128, 128, 8
    $region33: #{vae_forward.1} parent=1 // pred_fallthru
      _
    // Predicated region
    $region34: #{vae_forward.1} parent=1 // pred_check
      _
    $region35: #{vae_forward.1} parent=1 // pred_check_branch
      %76 = sbr.rel (0) target = $region37
    $region36: #{vae_forward.1} parent=1 // pred_region
      %s78 = ssub.s32 4096, 4096
      %79 = vsyncadd [#allocation8], %s78
      %s80 = sshll.u32 [#allocation9], 4
      %s81 = int_to_ptr.vmem [resolvable:$true] %s80
      %86 = dma.hbm_to_vmem [thread:$0]  %s8, 4096, %s81, [#allocation8], 128, 128, 8
    $region37: #{vae_forward.1} parent=1 // pred_fallthru
      _
    // Predicated region
    $region38: #{vae_forward.1} parent=1 // pred_check
      _
    $region39: #{vae_forward.1} parent=1 // pred_check_branch
      %88 = sbr.rel (0) target = $region41
    $region40: #{vae_forward.1} parent=1 // pred_region
      %s90 = ssub.s32 32, 32
      %91 = vsyncadd [#allocation11], %s90
      %s93 = sshll.u32 [#allocation10], 4
      %s94 = int_to_ptr.vmem [resolvable:$true] %s93
      %96 = dma.hbm_to_vmem [thread:$0]  %s9, 32, %s94, [#allocation11]
    $region41: #{vae_forward.1} parent=1 // pred_fallthru
      _
    // Predicated region
    $region42: #{vae_forward.1} parent=1 // pred_check
      _
    $region43: #{vae_forward.1} parent=1 // pred_check_branch
      %98 = sbr.rel (0) target = $region45
    $region44: #{vae_forward.1} parent=1 // pred_region
      %99 = dma.done [#allocation3], 1280
    $region45: #{vae_forward.1} parent=1 // pred_fallthru
      _
    // Predicated region
    $region46: #{vae_forward.1} parent=1 // pred_check
      _
    $region47: #{vae_forward.1} parent=1 // pred_check_branch
      %101 = sbr.rel (0) target = $region49
    $region48: #{vae_forward.1} parent=1 // pred_region
      %102 = dma.done [#allocation5], 80
    $region49: #{vae_forward.1} parent=1 // pred_fallthru
      _
    // Predicated region
    $region50: #{vae_forward.1} parent=1 // pred_check
      _
    $region51: #{vae_forward.1} parent=1 // pred_check_branch
      %104 = sbr.rel (0) target = $region53
    $region52: #{vae_forward.1} parent=1 // pred_region
      %105 = dma.done [#allocation5], 512
    $region53: #{vae_forward.1} parent=1 // pred_fallthru
      _
    // Predicated region
    $region54: #{vae_forward.1} parent=1 // pred_check
      _
    $region55: #{vae_forward.1} parent=1 // pred_check_branch
      %107 = sbr.rel (0) target = $region57
    $region56: #{vae_forward.1} parent=1 // pred_region
      %108 = dma.done [#allocation8], 256
    $region57: #{vae_forward.1} parent=1 // pred_fallthru
      _
    // Predicated region
    $region58: #{vae_forward.1} parent=1 // pred_check
      _
    $region59: #{vae_forward.1} parent=1 // pred_check_branch
      %110 = sbr.rel (0) target = $region61
    $region60: #{vae_forward.1} parent=1 // pred_region
      %111 = dma.done [#allocation8], 4096
    $region61: #{vae_forward.1} parent=1 // pred_fallthru
      _
    // Predicated region
    $region62: #{vae_forward.1} parent=1 // pred_check
      _
    $region63: #{vae_forward.1} parent=1 // pred_check_branch
      %113 = sbr.rel (0) target = $region65
    $region64: #{vae_forward.1} parent=1 // pred_region
      %114 = dma.done [#allocation11], 32
    $region65: #{vae_forward.1} parent=1 // pred_fallthru
      _
    %v115 = vld [vmem:[%s0] sm:$0xff]
    %v116 = vld [vmem:[%s0 + $0x8] sm:$0xff]
    %v117 = vld [vmem:[#allocation2] sm:$0xff]
    %v118 = vld [vmem:[#allocation2 + $0x8] sm:$0xff]
    %v119 = vld [vmem:[#allocation2 + $0x10] sm:$0xff]
    %v120 = vld [vmem:[#allocation2 + $0x18] sm:$0xff]
    %v121 = vld [vmem:[#allocation2 + $0x20] sm:$0xff]
    %v122 = vld [vmem:[#allocation2 + $0x28] sm:$0xff]
    %v123 = vld [vmem:[#allocation2 + $0x30] sm:$0xff]
    %v124 = vld [vmem:[#allocation2 + $0x38] sm:$0xff]
    %v125 = vld [vmem:[#allocation2 + $0x40] sm:$0xff]
    %v126 = vld [vmem:[#allocation2 + $0x48] sm:$0xff]
    %v127 = vld [vmem:[#allocation4] sm:$0x1f]
    %v129 = vlaneseq
    %v130 = vshrl.u32 %v129, 7
    %v131 = vsub.s32 0, %v130
    %v132 = vrot.slane %v127, %v131
    %v133 = vlaneseq
    %v134 = vshrl.u32 %v133, 7
    %v135 = vsub.s32 1, %v134
    %v136 = vrot.slane %v127, %v135
    %v137 = vlaneseq
    %v138 = vshrl.u32 %v137, 7
    %v139 = vsub.s32 2, %v138
    %v140 = vrot.slane %v127, %v139
    %v141 = vlaneseq
    %v142 = vshrl.u32 %v141, 7
    %v143 = vsub.s32 3, %v142
    %v144 = vrot.slane %v127, %v143
    %v145 = vlaneseq
    %v146 = vshrl.u32 %v145, 7
    %v147 = vsub.s32 4, %v146
    %v148 = vrot.slane %v127, %v147
    %vm154 = vcmask 130048
    %v156 = vsel %vm154, %v115, 0
    %v159 = vsel %vm154, %v116, 0
    %161 = vmatprep.subr.mxu0 0.0
    %162 = vmatpush1.msra.mxu0 0.0
    %163 = vmatprep.subr.mxu0 0.0
    %164 = vmatpush1.msra.mxu0 0.0
    %165 = vmatprep.subr.mxu0 0.0
    %166 = vmatpush1.msra.mxu0 0.0
    %167 = vmatprep.subr.mxu0 0.0
    %168 = vmatpush1.msra.mxu0 0.0
    %169 = vmatprep.subr.mxu0 0.0
    %170 = vmatpush1.msra.mxu0 0.0
    %171 = vmatprep.subr.mxu0 0.0
    %172 = vmatpush1.msra.mxu0 0.0
    %173 = vmatprep.subr.mxu0 0.0
    %174 = vmatpush1.msra.mxu0 0.0
    %175 = vmatprep.subr.mxu0 0.0
    %176 = vmatpush1.msra.mxu0 0.0
    %177 = vmatprep.subr.mxu0 0.0
    %178 = vmatpush1.msra.mxu0 0.0
    %179 = vmatprep.subr.mxu0 0.0
    %180 = vmatpush1.msra.mxu0 0.0
    %181 = vmatprep.subr.mxu0 0.0
    %182 = vmatpush1.msra.mxu0 0.0
    %183 = vmatprep.subr.mxu0 0.0
    %184 = vmatpush1.msra.mxu0 0.0
    %185 = vmatprep.subr.mxu0 0.0
    %186 = vmatpush1.msra.mxu0 0.0
    %187 = vmatprep.subr.mxu0 0.0
    %188 = vmatpush1.msra.mxu0 0.0
    %189 = vmatprep.subr.mxu0 %v123
    %190 = vmatpush1.msra.mxu0 %v122
    %191 = vmatprep.subr.mxu0 %v118
    %192 = vmatpush1.msra.mxu0 %v117
    %193 = vmatprep.subr.mxu0 0.0
    %194 = vmatpush2.msra.mxu0 0.0
    %195 = vmatprep.subr.mxu0 0.0
    %196 = vmatpush2.msra.mxu0 0.0
    %197 = vmatprep.subr.mxu0 0.0
    %198 = vmatpush2.msra.mxu0 0.0
    %199 = vmatprep.subr.mxu0 0.0
    %200 = vmatpush2.msra.mxu0 0.0
    %201 = vmatprep.subr.mxu0 0.0
    %202 = vmatpush2.msra.mxu0 0.0
    %203 = vmatprep.subr.mxu0 0.0
    %204 = vmatpush2.msra.mxu0 0.0
    %205 = vmatprep.subr.mxu0 0.0
    %206 = vmatpush2.msra.mxu0 0.0
    %207 = vmatprep.subr.mxu0 0.0
    %208 = vmatpush2.msra.mxu0 0.0
    %209 = vmatprep.subr.mxu0 0.0
    %210 = vmatpush2.msra.mxu0 0.0
    %211 = vmatprep.subr.mxu0 0.0
    %212 = vmatpush2.msra.mxu0 0.0
    %213 = vmatprep.subr.mxu0 0.0
    %214 = vmatpush2.msra.mxu0 0.0
    %215 = vmatprep.subr.mxu0 0.0
    %216 = vmatpush2.msra.mxu0 0.0
    %217 = vmatprep.subr.mxu0 0.0
    %218 = vmatpush2.msra.mxu0 0.0
    %219 = vmatprep.subr.mxu0 0.0
    %220 = vmatpush2.msra.mxu0 0.0
    %221 = vmatprep.subr.mxu0 0.0
    %222 = vmatpush2.msra.mxu0 0.0
    %223 = vmatprep.subr.mxu0 0.0
    %224 = vmatpush2.msra.mxu0 0.0
    %225 = vmatprep.mubr.f32.mxu0 0.0
    %226 = vmatmul.mubr.f32.gmra.mxu0 %v156
    %v227 = vpop.f32.mrf.mxu0
    %v228 = vadd.f32 %v132, %v227
    %v229 = vpop.f32.mrf.mxu0
    %v230 = vadd.f32 %v136, %v229
    %231 = vmatprep.mubr.f32.mxu0 0.0
    %232 = vmatmul.mubr.f32.gmra.mxu0 %v159
    %v233 = vpop.f32.mrf.mxu0
    %v234 = vadd.f32 %v132, %v233
    %v235 = vpop.f32.mrf.mxu0
    %v236 = vadd.f32 %v136, %v235
    %237 = vdwg.mxu0
    %238 = vmatprep.subr.mxu0 0.0
    %239 = vmatpush1.msra.mxu0 0.0
    %240 = vmatprep.subr.mxu0 0.0
    %241 = vmatpush1.msra.mxu0 0.0
    %242 = vmatprep.subr.mxu0 0.0
    %243 = vmatpush1.msra.mxu0 0.0
    %244 = vmatprep.subr.mxu0 0.0
    %245 = vmatpush1.msra.mxu0 0.0
    %246 = vmatprep.subr.mxu0 0.0
    %247 = vmatpush1.msra.mxu0 0.0
    %248 = vmatprep.subr.mxu0 0.0
    %249 = vmatpush1.msra.mxu0 0.0
    %250 = vmatprep.subr.mxu0 0.0
    %251 = vmatpush1.msra.mxu0 0.0
    %252 = vmatprep.subr.mxu0 0.0
    %253 = vmatpush1.msra.mxu0 0.0
    %254 = vmatprep.subr.mxu0 0.0
    %255 = vmatpush1.msra.mxu0 0.0
    %256 = vmatprep.subr.mxu0 0.0
    %257 = vmatpush1.msra.mxu0 0.0
    %258 = vmatprep.subr.mxu0 0.0
    %259 = vmatpush1.msra.mxu0 0.0
    %260 = vmatprep.subr.mxu0 0.0
    %261 = vmatpush1.msra.mxu0 0.0
    %262 = vmatprep.subr.mxu0 0.0
    %263 = vmatpush1.msra.mxu0 0.0
    %264 = vmatprep.subr.mxu0 0.0
    %265 = vmatpush1.msra.mxu0 0.0
    %266 = vmatprep.subr.mxu0 %v125
    %267 = vmatpush1.msra.mxu0 %v124
    %268 = vmatprep.subr.mxu0 %v120
    %269 = vmatpush1.msra.mxu0 %v119
    %270 = vmatprep.subr.mxu0 0.0
    %271 = vmatpush2.msra.mxu0 0.0
    %272 = vmatprep.subr.mxu0 0.0
    %273 = vmatpush2.msra.mxu0 0.0
    %274 = vmatprep.subr.mxu0 0.0
    %275 = vmatpush2.msra.mxu0 0.0
    %276 = vmatprep.subr.mxu0 0.0
    %277 = vmatpush2.msra.mxu0 0.0
    %278 = vmatprep.subr.mxu0 0.0
    %279 = vmatpush2.msra.mxu0 0.0
    %280 = vmatprep.subr.mxu0 0.0
    %281 = vmatpush2.msra.mxu0 0.0
    %282 = vmatprep.subr.mxu0 0.0
    %283 = vmatpush2.msra.mxu0 0.0
    %284 = vmatprep.subr.mxu0 0.0
    %285 = vmatpush2.msra.mxu0 0.0
    %286 = vmatprep.subr.mxu0 0.0
    %287 = vmatpush2.msra.mxu0 0.0
    %288 = vmatprep.subr.mxu0 0.0
    %289 = vmatpush2.msra.mxu0 0.0
    %290 = vmatprep.subr.mxu0 0.0
    %291 = vmatpush2.msra.mxu0 0.0
    %292 = vmatprep.subr.mxu0 0.0
    %293 = vmatpush2.msra.mxu0 0.0
    %294 = vmatprep.subr.mxu0 0.0
    %295 = vmatpush2.msra.mxu0 0.0
    %296 = vmatprep.subr.mxu0 0.0
    %297 = vmatpush2.msra.mxu0 0.0
    %298 = vmatprep.subr.mxu0 0.0
    %299 = vmatpush2.msra.mxu0 0.0
    %300 = vmatprep.subr.mxu0 0.0
    %301 = vmatpush2.msra.mxu0 0.0
    %302 = vmatprep.mubr.f32.mxu0 0.0
    %303 = vmatmul.mubr.f32.gmra.mxu0 %v156
    %v304 = vpop.f32.mrf.mxu0
    %v305 = vadd.f32 %v140, %v304
    %v306 = vpop.f32.mrf.mxu0
    %v307 = vadd.f32 %v144, %v306
    %308 = vmatprep.mubr.f32.mxu0 0.0
    %309 = vmatmul.mubr.f32.gmra.mxu0 %v159
    %v310 = vpop.f32.mrf.mxu0
    %v311 = vadd.f32 %v140, %v310
    %v312 = vpop.f32.mrf.mxu0
    %v313 = vadd.f32 %v144, %v312
    %314 = vdwg.mxu0
    %315 = vmatprep.subr.mxu0 0.0
    %316 = vmatpush1.msra.mxu0 0.0
    %317 = vmatprep.subr.mxu0 0.0
    %318 = vmatpush1.msra.mxu0 0.0
    %319 = vmatprep.subr.mxu0 0.0
    %320 = vmatpush1.msra.mxu0 0.0
    %321 = vmatprep.subr.mxu0 0.0
    %322 = vmatpush1.msra.mxu0 0.0
    %323 = vmatprep.subr.mxu0 0.0
    %324 = vmatpush1.msra.mxu0 0.0
    %325 = vmatprep.subr.mxu0 0.0
    %326 = vmatpush1.msra.mxu0 0.0
    %327 = vmatprep.subr.mxu0 0.0
    %328 = vmatpush1.msra.mxu0 0.0
    %329 = vmatprep.subr.mxu0 0.0
    %330 = vmatpush1.msra.mxu0 0.0
    %331 = vmatprep.subr.mxu0 0.0
    %332 = vmatpush1.msra.mxu0 0.0
    %333 = vmatprep.subr.mxu0 0.0
    %334 = vmatpush1.msra.mxu0 0.0
    %335 = vmatprep.subr.mxu0 0.0
    %336 = vmatpush1.msra.mxu0 0.0
    %337 = vmatprep.subr.mxu0 0.0
    %338 = vmatpush1.msra.mxu0 0.0
    %339 = vmatprep.subr.mxu0 0.0
    %340 = vmatpush1.msra.mxu0 0.0
    %341 = vmatprep.subr.mxu0 0.0
    %342 = vmatpush1.msra.mxu0 0.0
    %343 = vmatprep.subr.mxu0 0.0
    %344 = vmatpush1.msra.mxu0 %v126
    %345 = vmatprep.subr.mxu0 0.0
    %346 = vmatpush1.msra.mxu0 %v121
    %347 = vmatprep.subr.mxu0 0.0
    %348 = vmatpush2.msra.mxu0 0.0
    %349 = vmatprep.subr.mxu0 0.0
    %350 = vmatpush2.msra.mxu0 0.0
    %351 = vmatprep.subr.mxu0 0.0
    %352 = vmatpush2.msra.mxu0 0.0
    %353 = vmatprep.subr.mxu0 0.0
    %354 = vmatpush2.msra.mxu0 0.0
    %355 = vmatprep.subr.mxu0 0.0
    %356 = vmatpush2.msra.mxu0 0.0
    %357 = vmatprep.subr.mxu0 0.0
    %358 = vmatpush2.msra.mxu0 0.0
    %359 = vmatprep.subr.mxu0 0.0
    %360 = vmatpush2.msra.mxu0 0.0
    %361 = vmatprep.subr.mxu0 0.0
    %362 = vmatpush2.msra.mxu0 0.0
    %363 = vmatprep.subr.mxu0 0.0
    %364 = vmatpush2.msra.mxu0 0.0
    %365 = vmatprep.subr.mxu0 0.0
    %366 = vmatpush2.msra.mxu0 0.0
    %367 = vmatprep.subr.mxu0 0.0
    %368 = vmatpush2.msra.mxu0 0.0
    %369 = vmatprep.subr.mxu0 0.0
    %370 = vmatpush2.msra.mxu0 0.0
    %371 = vmatprep.subr.mxu0 0.0
    %372 = vmatpush2.msra.mxu0 0.0
    %373 = vmatprep.subr.mxu0 0.0
    %374 = vmatpush2.msra.mxu0 0.0
    %375 = vmatprep.subr.mxu0 0.0
    %376 = vmatpush2.msra.mxu0 0.0
    %377 = vmatprep.subr.mxu0 0.0
    %378 = vmatpush2.msra.mxu0 0.0
    %379 = vmatprep.mubr.f32.mxu0 0.0
    %380 = vmatmul.mubr.f32.gmra.mxu0 %v156
    %v381 = vpop.f32.mrf.mxu0
    %v382 = vadd.f32 %v148, %v381
    %v383 = vpop.f32.mrf.mxu0
    %384 = vmatprep.mubr.f32.mxu0 0.0
    %385 = vmatmul.mubr.f32.gmra.mxu0 %v159
    %v386 = vpop.f32.mrf.mxu0
    %v387 = vadd.f32 %v148, %v386
    %v388 = vpop.f32.mrf.mxu0
    %389 = vdwg.mxu0
    %v390 = vld [vmem:[%s4] sm:$0xff]
    %v391 = vld [vmem:[%s4 + $0x8] sm:$0xff]
    %v392 = vld [vmem:[%s4 + $0x10] sm:$0xff]
    %v393 = vld [vmem:[%s4 + $0x18] sm:$0xff]
    %v394 = vld [vmem:[%s4 + $0x20] sm:$0xff]
    %v395 = vld [vmem:[%s4 + $0x28] sm:$0xff]
    %v396 = vld [vmem:[%s4 + $0x30] sm:$0xff]
    %v397 = vld [vmem:[%s4 + $0x38] sm:$0xff]
    %v398 = vld [vmem:[%s4 + $0x40] sm:$0xff]
    %v399 = vld [vmem:[%s4 + $0x48] sm:$0xff]
    %v400 = vld [vmem:[%s4 + $0x50] sm:$0xff]
    %v401 = vld [vmem:[%s4 + $0x58] sm:$0xff]
    %v402 = vld [vmem:[%s4 + $0x60] sm:$0xff]
    %v403 = vld [vmem:[%s4 + $0x68] sm:$0xff]
    %v404 = vld [vmem:[%s4 + $0x70] sm:$0xff]
    %v405 = vld [vmem:[%s4 + $0x78] sm:$0xff]
    %v406 = vld [vmem:[#allocation6] sm:$0xff]
    %v407 = vld [vmem:[#allocation6 + $0x8] sm:$0xff]
    %v408 = vld [vmem:[#allocation6 + $0x10] sm:$0xff]
    %v409 = vld [vmem:[#allocation6 + $0x18] sm:$0xff]
    %v410 = vlaneseq
    %v411 = vand.u32 %v410, 127
    %v412 = vadd.s32 %v411, 128
    %vm413 = vcmp.ge.s32.totalorder %v411, 128
    %vm414 = vcmp.ge.s32.totalorder %v412, 128
    %vm415 = vcmp.lt.s32.totalorder %v411, 192
    %vm416 = vcmp.lt.s32.totalorder %v412, 192
    %vm417 = vmand %vm413, %vm415
    %vm418 = vmand %vm414, %vm416
    %v419 = vsel %vm417, 1.0, 0.5
    %v420 = vsel %vm418, 1.0, 0.5
    %v421 = vsel %vm417, 0.0, 0.5
    %v422 = vsel %vm418, 0.0, 0.5
    %vm423 = vcmp.ge.s32.totalorder %v411, 64
    %vm424 = vcmp.lt.s32.totalorder %v411, 96
    %vm425 = vmand %vm423, %vm424
    %v426 = vsel %vm425, 1.0, 0.5
    %v427 = vsel %vm425, 0.0, 0.5
    %v430 = vrot.slane %v311, 6
    %v431 = vrot.slane %v313, 6
    %v434 = vadd.f32 %v228, %v430
    %v435 = vadd.f32 %v230, %v431
    %vm436 = vcmask 523264
    %v438 = vsel %vm436, 0.0, 0
    %440 = vmatprep.subr.mxu0 0.0
    %441 = vmatpush1.msra.mxu0 0.0
    %442 = vmatprep.subr.mxu0 0.0
    %443 = vmatpush1.msra.mxu0 0.0
    %444 = vmatprep.subr.mxu0 0.0
    %445 = vmatpush1.msra.mxu0 0.0
    %446 = vmatprep.subr.mxu0 0.0
    %447 = vmatpush1.msra.mxu0 0.0
    %448 = vmatprep.subr.mxu0 0.0
    %449 = vmatpush1.msra.mxu0 0.0
    %450 = vmatprep.subr.mxu0 0.0
    %451 = vmatpush1.msra.mxu0 0.0
    %452 = vmatprep.subr.mxu0 0.0
    %453 = vmatpush1.msra.mxu0 0.0
    %454 = vmatprep.subr.mxu0 0.0
    %455 = vmatpush1.msra.mxu0 0.0
    %456 = vmatprep.subr.mxu0 %v405
    %457 = vmatpush1.msra.mxu0 %v404
    %458 = vmatprep.subr.mxu0 %v403
    %459 = vmatpush1.msra.mxu0 %v402
    %460 = vmatprep.subr.mxu0 %v401
    %461 = vmatpush1.msra.mxu0 %v400
    %462 = vmatprep.subr.mxu0 %v399
    %463 = vmatpush1.msra.mxu0 %v398
    %464 = vmatprep.subr.mxu0 %v397
    %465 = vmatpush1.msra.mxu0 %v396
    %466 = vmatprep.subr.mxu0 %v395
    %467 = vmatpush1.msra.mxu0 %v394
    %468 = vmatprep.subr.mxu0 %v393
    %469 = vmatpush1.msra.mxu0 %v392
    %470 = vmatprep.subr.mxu0 %v391
    %471 = vmatpush1.msra.mxu0 %v390
    %472 = vmatprep.subr.mxu0 0.0
    %473 = vmatpush2.msra.mxu0 0.0
    %474 = vmatprep.subr.mxu0 0.0
    %475 = vmatpush2.msra.mxu0 0.0
    %476 = vmatprep.subr.mxu0 0.0
    %477 = vmatpush2.msra.mxu0 0.0
    %478 = vmatprep.subr.mxu0 0.0
    %479 = vmatpush2.msra.mxu0 0.0
    %480 = vmatprep.subr.mxu0 0.0
    %481 = vmatpush2.msra.mxu0 0.0
    %482 = vmatprep.subr.mxu0 0.0
    %483 = vmatpush2.msra.mxu0 0.0
    %484 = vmatprep.subr.mxu0 0.0
    %485 = vmatpush2.msra.mxu0 0.0
    %486 = vmatprep.subr.mxu0 0.0
    %487 = vmatpush2.msra.mxu0 0.0
    %488 = vmatprep.subr.mxu0 0.0
    %489 = vmatpush2.msra.mxu0 0.0
    %490 = vmatprep.subr.mxu0 0.0
    %491 = vmatpush2.msra.mxu0 0.0
    %492 = vmatprep.subr.mxu0 0.0
    %493 = vmatpush2.msra.mxu0 0.0
    %494 = vmatprep.subr.mxu0 0.0
    %495 = vmatpush2.msra.mxu0 0.0
    %496 = vmatprep.subr.mxu0 0.0
    %497 = vmatpush2.msra.mxu0 0.0
    %498 = vmatprep.subr.mxu0 0.0
    %499 = vmatpush2.msra.mxu0 0.0
    %500 = vmatprep.subr.mxu0 0.0
    %501 = vmatpush2.msra.mxu0 0.0
    %502 = vmatprep.subr.mxu0 0.0
    %503 = vmatpush2.msra.mxu0 0.0
    %504 = vmatprep.mubr.f32.mxu0 0.0
    %505 = vmatmul.mubr.f32.gmra.mxu0 %v438
    %v506 = vpop.f32.mrf.mxu0
    %v507 = vadd.f32 0.0, %v506
    %v508 = vpop.f32.mrf.mxu0
    %v509 = vadd.f32 0.0, %v508
    %510 = vdwg.mxu0
    %v511 = vadd.f32 %v434, %v507
    %v512 = vadd.f32 %v435, %v509
    %v513 = vmul.f32 %v419, %v511
    %v514 = vmul.f32 %v420, %v512
    %v515 = vtanh.pop %v513
    %v516 = vtanh.pop %v514
    %v517 = vmul.f32 %v419, %v515
    %v518 = vmul.f32 %v420, %v516
    %v519 = vadd.f32 %v517, %v421
    %v520 = vadd.f32 %v518, %v422
    %v521 = vmul.f32 %v519, 0.0
    %v522 = vmul.f32 %v519, %v520
    %524 = vrot.lane.b32.xlu0 %v522, 64
    %v525 = vpop.permute.xlu0 %524
    %v527 = vadd.f32 %v521, %v525
    %v528 = vtanh.pop %v527
    %v529 = vmul.f32 %v520, %v528
    %v530 = vrot.slane %v311, 2
    %v531 = vrot.slane %v313, 2
    %v534 = vadd.f32 %v228, %v530
    %v535 = vadd.f32 %v230, %v531
    %537 = vrot.lane.b32.xlu0 %v529, 64
    %v538 = vpop.permute.xlu0 %537
    %v539 = vsel %vm436, %v538, 0
    %541 = vmatprep.subr.mxu0 0.0
    %542 = vmatpush1.msra.mxu0 0.0
    %543 = vmatprep.subr.mxu0 0.0
    %544 = vmatpush1.msra.mxu0 0.0
    %545 = vmatprep.subr.mxu0 0.0
    %546 = vmatpush1.msra.mxu0 0.0
    %547 = vmatprep.subr.mxu0 0.0
    %548 = vmatpush1.msra.mxu0 0.0
    %549 = vmatprep.subr.mxu0 0.0
    %550 = vmatpush1.msra.mxu0 0.0
    %551 = vmatprep.subr.mxu0 0.0
    %552 = vmatpush1.msra.mxu0 0.0
    %553 = vmatprep.subr.mxu0 0.0
    %554 = vmatpush1.msra.mxu0 0.0
    %555 = vmatprep.subr.mxu0 0.0
    %556 = vmatpush1.msra.mxu0 0.0
    %557 = vmatprep.subr.mxu0 %v405
    %558 = vmatpush1.msra.mxu0 %v404
    %559 = vmatprep.subr.mxu0 %v403
    %560 = vmatpush1.msra.mxu0 %v402
    %561 = vmatprep.subr.mxu0 %v401
    %562 = vmatpush1.msra.mxu0 %v400
    %563 = vmatprep.subr.mxu0 %v399
    %564 = vmatpush1.msra.mxu0 %v398
    %565 = vmatprep.subr.mxu0 %v397
    %566 = vmatpush1.msra.mxu0 %v396
    %567 = vmatprep.subr.mxu0 %v395
    %568 = vmatpush1.msra.mxu0 %v394
    %569 = vmatprep.subr.mxu0 %v393
    %570 = vmatpush1.msra.mxu0 %v392
    %571 = vmatprep.subr.mxu0 %v391
    %572 = vmatpush1.msra.mxu0 %v390
    %573 = vmatprep.subr.mxu0 0.0
    %574 = vmatpush2.msra.mxu0 0.0
    %575 = vmatprep.subr.mxu0 0.0
    %576 = vmatpush2.msra.mxu0 0.0
    %577 = vmatprep.subr.mxu0 0.0
    %578 = vmatpush2.msra.mxu0 0.0
    %579 = vmatprep.subr.mxu0 0.0
    %580 = vmatpush2.msra.mxu0 0.0
    %581 = vmatprep.subr.mxu0 0.0
    %582 = vmatpush2.msra.mxu0 0.0
    %583 = vmatprep.subr.mxu0 0.0
    %584 = vmatpush2.msra.mxu0 0.0
    %585 = vmatprep.subr.mxu0 0.0
    %586 = vmatpush2.msra.mxu0 0.0
    %587 = vmatprep.subr.mxu0 0.0
    %588 = vmatpush2.msra.mxu0 0.0
    %589 = vmatprep.subr.mxu0 0.0
    %590 = vmatpush2.msra.mxu0 0.0
    %591 = vmatprep.subr.mxu0 0.0
    %592 = vmatpush2.msra.mxu0 0.0
    %593 = vmatprep.subr.mxu0 0.0
    %594 = vmatpush2.msra.mxu0 0.0
    %595 = vmatprep.subr.mxu0 0.0
    %596 = vmatpush2.msra.mxu0 0.0
    %597 = vmatprep.subr.mxu0 0.0
    %598 = vmatpush2.msra.mxu0 0.0
    %599 = vmatprep.subr.mxu0 0.0
    %600 = vmatpush2.msra.mxu0 0.0
    %601 = vmatprep.subr.mxu0 0.0
    %602 = vmatpush2.msra.mxu0 0.0
    %603 = vmatprep.subr.mxu0 0.0
    %604 = vmatpush2.msra.mxu0 0.0
    %605 = vmatprep.mubr.f32.mxu0 0.0
    %606 = vmatmul.mubr.f32.gmra.mxu0 %v539
    %v607 = vpop.f32.mrf.mxu0
    %v608 = vadd.f32 0.0, %v607
    %v609 = vpop.f32.mrf.mxu0
    %v610 = vadd.f32 0.0, %v609
    %611 = vdwg.mxu0
    %v614 = vrot.slane %v608, 6
    %v615 = vrot.slane %v610, 6
    %v618 = vadd.f32 %v534, %v614
    %v619 = vadd.f32 %v535, %v615
    %v620 = vmul.f32 %v419, %v618
    %v621 = vmul.f32 %v420, %v619
    %v622 = vtanh.pop %v620
    %v623 = vtanh.pop %v621
    %v624 = vmul.f32 %v419, %v622
    %v625 = vmul.f32 %v420, %v623
    %v626 = vadd.f32 %v624, %v421
    %v627 = vadd.f32 %v625, %v422
    %v629 = vrot.slane %v527, 6
    %v631 = vmul.f32 %v626, %v629
    %v632 = vmul.f32 %v626, %v627
    %634 = vrot.lane.b32.xlu0 %v632, 64
    %v635 = vpop.permute.xlu0 %634
    %v637 = vadd.f32 %v631, %v635
    %v638 = vtanh.pop %v637
    %v639 = vmul.f32 %v627, %v638
    %v641 = vrot.slane %v639, 2
    %642 = vrot.lane.b32.xlu0 %v641, 64
    %v643 = vpop.permute.xlu0 %642
    %v644 = vsel %vm436, %v643, 0
    %646 = vmatprep.subr.mxu0 0.0
    %647 = vmatpush1.msra.mxu0 0.0
    %648 = vmatprep.subr.mxu0 0.0
    %649 = vmatpush1.msra.mxu0 0.0
    %650 = vmatprep.subr.mxu0 0.0
    %651 = vmatpush1.msra.mxu0 0.0
    %652 = vmatprep.subr.mxu0 0.0
    %653 = vmatpush1.msra.mxu0 0.0
    %654 = vmatprep.subr.mxu0 0.0
    %655 = vmatpush1.msra.mxu0 0.0
    %656 = vmatprep.subr.mxu0 0.0
    %657 = vmatpush1.msra.mxu0 0.0
    %658 = vmatprep.subr.mxu0 0.0
    %659 = vmatpush1.msra.mxu0 0.0
    %660 = vmatprep.subr.mxu0 0.0
    %661 = vmatpush1.msra.mxu0 0.0
    %662 = vmatprep.subr.mxu0 %v405
    %663 = vmatpush1.msra.mxu0 %v404
    %664 = vmatprep.subr.mxu0 %v403
    %665 = vmatpush1.msra.mxu0 %v402
    %666 = vmatprep.subr.mxu0 %v401
    %667 = vmatpush1.msra.mxu0 %v400
    %668 = vmatprep.subr.mxu0 %v399
    %669 = vmatpush1.msra.mxu0 %v398
    %670 = vmatprep.subr.mxu0 %v397
    %671 = vmatpush1.msra.mxu0 %v396
    %672 = vmatprep.subr.mxu0 %v395
    %673 = vmatpush1.msra.mxu0 %v394
    %674 = vmatprep.subr.mxu0 %v393
    %675 = vmatpush1.msra.mxu0 %v392
    %676 = vmatprep.subr.mxu0 %v391
    %677 = vmatpush1.msra.mxu0 %v390
    %678 = vmatprep.subr.mxu0 0.0
    %679 = vmatpush2.msra.mxu0 0.0
    %680 = vmatprep.subr.mxu0 0.0
    %681 = vmatpush2.msra.mxu0 0.0
    %682 = vmatprep.subr.mxu0 0.0
    %683 = vmatpush2.msra.mxu0 0.0
    %684 = vmatprep.subr.mxu0 0.0
    %685 = vmatpush2.msra.mxu0 0.0
    %686 = vmatprep.subr.mxu0 0.0
    %687 = vmatpush2.msra.mxu0 0.0
    %688 = vmatprep.subr.mxu0 0.0
    %689 = vmatpush2.msra.mxu0 0.0
    %690 = vmatprep.subr.mxu0 0.0
    %691 = vmatpush2.msra.mxu0 0.0
    %692 = vmatprep.subr.mxu0 0.0
    %693 = vmatpush2.msra.mxu0 0.0
    %694 = vmatprep.subr.mxu0 0.0
    %695 = vmatpush2.msra.mxu0 0.0
    %696 = vmatprep.subr.mxu0 0.0
    %697 = vmatpush2.msra.mxu0 0.0
    %698 = vmatprep.subr.mxu0 0.0
    %699 = vmatpush2.msra.mxu0 0.0
    %700 = vmatprep.subr.mxu0 0.0
    %701 = vmatpush2.msra.mxu0 0.0
    %702 = vmatprep.subr.mxu0 0.0
    %703 = vmatpush2.msra.mxu0 0.0
    %704 = vmatprep.subr.mxu0 0.0
    %705 = vmatpush2.msra.mxu0 0.0
    %706 = vmatprep.subr.mxu0 0.0
    %707 = vmatpush2.msra.mxu0 0.0
    %708 = vmatprep.subr.mxu0 0.0
    %709 = vmatpush2.msra.mxu0 0.0
    %710 = vmatprep.mubr.f32.mxu0 0.0
    %711 = vmatmul.mubr.f32.gmra.mxu0 %v644
    %v712 = vpop.f32.mrf.mxu0
    %v713 = vadd.f32 0.0, %v712
    %v714 = vpop.f32.mrf.mxu0
    %v715 = vadd.f32 0.0, %v714
    %716 = vdwg.mxu0
    %v719 = vrot.slane %v713, 4
    %v720 = vrot.slane %v715, 4
    %v723 = vadd.f32 %v434, %v719
    %v724 = vadd.f32 %v435, %v720
    %v725 = vmul.f32 %v419, %v723
    %v726 = vmul.f32 %v420, %v724
    %v727 = vtanh.pop %v725
    %v728 = vtanh.pop %v726
    %v729 = vmul.f32 %v419, %v727
    %v730 = vmul.f32 %v420, %v728
    %v731 = vadd.f32 %v729, %v421
    %v732 = vadd.f32 %v730, %v422
    %v734 = vrot.slane %v637, 6
    %v736 = vmul.f32 %v731, %v734
    %v737 = vmul.f32 %v731, %v732
    %739 = vrot.lane.b32.xlu0 %v737, 64
    %v740 = vpop.permute.xlu0 %739
    %v742 = vadd.f32 %v736, %v740
    %v743 = vtanh.pop %v742
    %v744 = vmul.f32 %v732, %v743
    %v746 = vrot.slane %v744, 4
    %747 = vrot.lane.b32.xlu0 %v746, 64
    %v748 = vpop.permute.xlu0 %747
    %v749 = vsel %vm436, %v748, 0
    %751 = vmatprep.subr.mxu0 0.0
    %752 = vmatpush1.msra.mxu0 0.0
    %753 = vmatprep.subr.mxu0 0.0
    %754 = vmatpush1.msra.mxu0 0.0
    %755 = vmatprep.subr.mxu0 0.0
    %756 = vmatpush1.msra.mxu0 0.0
    %757 = vmatprep.subr.mxu0 0.0
    %758 = vmatpush1.msra.mxu0 0.0
    %759 = vmatprep.subr.mxu0 0.0
    %760 = vmatpush1.msra.mxu0 0.0
    %761 = vmatprep.subr.mxu0 0.0
    %762 = vmatpush1.msra.mxu0 0.0
    %763 = vmatprep.subr.mxu0 0.0
    %764 = vmatpush1.msra.mxu0 0.0
    %765 = vmatprep.subr.mxu0 0.0
    %766 = vmatpush1.msra.mxu0 0.0
    %767 = vmatprep.subr.mxu0 %v405
    %768 = vmatpush1.msra.mxu0 %v404
    %769 = vmatprep.subr.mxu0 %v403
    %770 = vmatpush1.msra.mxu0 %v402
    %771 = vmatprep.subr.mxu0 %v401
    %772 = vmatpush1.msra.mxu0 %v400
    %773 = vmatprep.subr.mxu0 %v399
    %774 = vmatpush1.msra.mxu0 %v398
    %775 = vmatprep.subr.mxu0 %v397
    %776 = vmatpush1.msra.mxu0 %v396
    %777 = vmatprep.subr.mxu0 %v395
    %778 = vmatpush1.msra.mxu0 %v394
    %779 = vmatprep.subr.mxu0 %v393
    %780 = vmatpush1.msra.mxu0 %v392
    %781 = vmatprep.subr.mxu0 %v391
    %782 = vmatpush1.msra.mxu0 %v390
    %783 = vmatprep.subr.mxu0 0.0
    %784 = vmatpush2.msra.mxu0 0.0
    %785 = vmatprep.subr.mxu0 0.0
    %786 = vmatpush2.msra.mxu0 0.0
    %787 = vmatprep.subr.mxu0 0.0
    %788 = vmatpush2.msra.mxu0 0.0
    %789 = vmatprep.subr.mxu0 0.0
    %790 = vmatpush2.msra.mxu0 0.0
    %791 = vmatprep.subr.mxu0 0.0
    %792 = vmatpush2.msra.mxu0 0.0
    %793 = vmatprep.subr.mxu0 0.0
    %794 = vmatpush2.msra.mxu0 0.0
    %795 = vmatprep.subr.mxu0 0.0
    %796 = vmatpush2.msra.mxu0 0.0
    %797 = vmatprep.subr.mxu0 0.0
    %798 = vmatpush2.msra.mxu0 0.0
    %799 = vmatprep.subr.mxu0 0.0
    %800 = vmatpush2.msra.mxu0 0.0
    %801 = vmatprep.subr.mxu0 0.0
    %802 = vmatpush2.msra.mxu0 0.0
    %803 = vmatprep.subr.mxu0 0.0
    %804 = vmatpush2.msra.mxu0 0.0
    %805 = vmatprep.subr.mxu0 0.0
    %806 = vmatpush2.msra.mxu0 0.0
    %807 = vmatprep.subr.mxu0 0.0
    %808 = vmatpush2.msra.mxu0 0.0
    %809 = vmatprep.subr.mxu0 0.0
    %810 = vmatpush2.msra.mxu0 0.0
    %811 = vmatprep.subr.mxu0 0.0
    %812 = vmatpush2.msra.mxu0 0.0
    %813 = vmatprep.subr.mxu0 0.0
    %814 = vmatpush2.msra.mxu0 0.0
    %815 = vmatprep.mubr.f32.mxu0 0.0
    %816 = vmatmul.mubr.f32.gmra.mxu0 %v749
    %v817 = vpop.f32.mrf.mxu0
    %v818 = vadd.f32 0.0, %v817
    %v819 = vpop.f32.mrf.mxu0
    %v820 = vadd.f32 0.0, %v819
    %821 = vdwg.mxu0
    %v824 = vrot.slane %v818, 2
    %v825 = vrot.slane %v820, 2
    %v828 = vadd.f32 %v534, %v824
    %v829 = vadd.f32 %v535, %v825
    %v830 = vmul.f32 %v419, %v828
    %v831 = vmul.f32 %v420, %v829
    %v832 = vtanh.pop %v830
    %v833 = vtanh.pop %v831
    %v834 = vmul.f32 %v419, %v832
    %v835 = vmul.f32 %v420, %v833
    %v836 = vadd.f32 %v834, %v421
    %v837 = vadd.f32 %v835, %v422
    %v839 = vrot.slane %v742, 6
    %v841 = vmul.f32 %v836, %v839
    %v842 = vmul.f32 %v836, %v837
    %844 = vrot.lane.b32.xlu0 %v842, 64
    %v845 = vpop.permute.xlu0 %844
    %v847 = vadd.f32 %v841, %v845
    %v848 = vtanh.pop %v847
    %v849 = vmul.f32 %v837, %v848
    %v852 = vrot.slane %v305, 6
    %v853 = vrot.slane %v307, 6
    %v856 = vadd.f32 %v234, %v852
    %v857 = vadd.f32 %v236, %v853
    %v859 = vrot.slane %v849, 6
    %860 = vrot.lane.b32.xlu0 %v859, 64
    %v861 = vpop.permute.xlu0 %860
    %v862 = vsel %vm436, %v861, 0
    %864 = vmatprep.subr.mxu0 0.0
    %865 = vmatpush1.msra.mxu0 0.0
    %866 = vmatprep.subr.mxu0 0.0
    %867 = vmatpush1.msra.mxu0 0.0
    %868 = vmatprep.subr.mxu0 0.0
    %869 = vmatpush1.msra.mxu0 0.0
    %870 = vmatprep.subr.mxu0 0.0
    %871 = vmatpush1.msra.mxu0 0.0
    %872 = vmatprep.subr.mxu0 0.0
    %873 = vmatpush1.msra.mxu0 0.0
    %874 = vmatprep.subr.mxu0 0.0
    %875 = vmatpush1.msra.mxu0 0.0
    %876 = vmatprep.subr.mxu0 0.0
    %877 = vmatpush1.msra.mxu0 0.0
    %878 = vmatprep.subr.mxu0 0.0
    %879 = vmatpush1.msra.mxu0 0.0
    %880 = vmatprep.subr.mxu0 %v405
    %881 = vmatpush1.msra.mxu0 %v404
    %882 = vmatprep.subr.mxu0 %v403
    %883 = vmatpush1.msra.mxu0 %v402
    %884 = vmatprep.subr.mxu0 %v401
    %885 = vmatpush1.msra.mxu0 %v400
    %886 = vmatprep.subr.mxu0 %v399
    %887 = vmatpush1.msra.mxu0 %v398
    %888 = vmatprep.subr.mxu0 %v397
    %889 = vmatpush1.msra.mxu0 %v396
    %890 = vmatprep.subr.mxu0 %v395
    %891 = vmatpush1.msra.mxu0 %v394
    %892 = vmatprep.subr.mxu0 %v393
    %893 = vmatpush1.msra.mxu0 %v392
    %894 = vmatprep.subr.mxu0 %v391
    %895 = vmatpush1.msra.mxu0 %v390
    %896 = vmatprep.subr.mxu0 0.0
    %897 = vmatpush2.msra.mxu0 0.0
    %898 = vmatprep.subr.mxu0 0.0
    %899 = vmatpush2.msra.mxu0 0.0
    %900 = vmatprep.subr.mxu0 0.0
    %901 = vmatpush2.msra.mxu0 0.0
    %902 = vmatprep.subr.mxu0 0.0
    %903 = vmatpush2.msra.mxu0 0.0
    %904 = vmatprep.subr.mxu0 0.0
    %905 = vmatpush2.msra.mxu0 0.0
    %906 = vmatprep.subr.mxu0 0.0
    %907 = vmatpush2.msra.mxu0 0.0
    %908 = vmatprep.subr.mxu0 0.0
    %909 = vmatpush2.msra.mxu0 0.0
    %910 = vmatprep.subr.mxu0 0.0
    %911 = vmatpush2.msra.mxu0 0.0
    %912 = vmatprep.subr.mxu0 0.0
    %913 = vmatpush2.msra.mxu0 0.0
    %914 = vmatprep.subr.mxu0 0.0
    %915 = vmatpush2.msra.mxu0 0.0
    %916 = vmatprep.subr.mxu0 0.0
    %917 = vmatpush2.msra.mxu0 0.0
    %918 = vmatprep.subr.mxu0 0.0
    %919 = vmatpush2.msra.mxu0 0.0
    %920 = vmatprep.subr.mxu0 0.0
    %921 = vmatpush2.msra.mxu0 0.0
    %922 = vmatprep.subr.mxu0 0.0
    %923 = vmatpush2.msra.mxu0 0.0
    %924 = vmatprep.subr.mxu0 0.0
    %925 = vmatpush2.msra.mxu0 0.0
    %926 = vmatprep.subr.mxu0 0.0
    %927 = vmatpush2.msra.mxu0 0.0
    %928 = vmatprep.mubr.f32.mxu0 0.0
    %929 = vmatmul.mubr.f32.gmra.mxu0 %v862
    %v930 = vpop.f32.mrf.mxu0
    %v931 = vadd.f32 0.0, %v930
    %v932 = vpop.f32.mrf.mxu0
    %v933 = vadd.f32 0.0, %v932
    %934 = vdwg.mxu0
    %v935 = vadd.f32 %v856, %v931
    %v936 = vadd.f32 %v857, %v933
    %v937 = vmul.f32 %v419, %v935
    %v938 = vmul.f32 %v420, %v936
    %v939 = vtanh.pop %v937
    %v940 = vtanh.pop %v938
    %v941 = vmul.f32 %v419, %v939
    %v942 = vmul.f32 %v420, %v940
    %v943 = vadd.f32 %v941, %v421
    %v944 = vadd.f32 %v942, %v422
    %v946 = vrot.slane %v847, 6
    %v948 = vmul.f32 %v943, %v946
    %v949 = vmul.f32 %v943, %v944
    %951 = vrot.lane.b32.xlu0 %v949, 64
    %v952 = vpop.permute.xlu0 %951
    %v954 = vadd.f32 %v948, %v952
    %v955 = vtanh.pop %v954
    %v956 = vmul.f32 %v944, %v955
    %v957 = vrot.slane %v305, 2
    %v958 = vrot.slane %v307, 2
    %v961 = vadd.f32 %v234, %v957
    %v962 = vadd.f32 %v236, %v958
    %964 = vrot.lane.b32.xlu0 %v956, 64
    %v965 = vpop.permute.xlu0 %964
    %v966 = vsel %vm436, %v965, 0
    %968 = vmatprep.subr.mxu0 0.0
    %969 = vmatpush1.msra.mxu0 0.0
    %970 = vmatprep.subr.mxu0 0.0
    %971 = vmatpush1.msra.mxu0 0.0
    %972 = vmatprep.subr.mxu0 0.0
    %973 = vmatpush1.msra.mxu0 0.0
    %974 = vmatprep.subr.mxu0 0.0
    %975 = vmatpush1.msra.mxu0 0.0
    %976 = vmatprep.subr.mxu0 0.0
    %977 = vmatpush1.msra.mxu0 0.0
    %978 = vmatprep.subr.mxu0 0.0
    %979 = vmatpush1.msra.mxu0 0.0
    %980 = vmatprep.subr.mxu0 0.0
    %981 = vmatpush1.msra.mxu0 0.0
    %982 = vmatprep.subr.mxu0 0.0
    %983 = vmatpush1.msra.mxu0 0.0
    %984 = vmatprep.subr.mxu0 %v405
    %985 = vmatpush1.msra.mxu0 %v404
    %986 = vmatprep.subr.mxu0 %v403
    %987 = vmatpush1.msra.mxu0 %v402
    %988 = vmatprep.subr.mxu0 %v401
    %989 = vmatpush1.msra.mxu0 %v400
    %990 = vmatprep.subr.mxu0 %v399
    %991 = vmatpush1.msra.mxu0 %v398
    %992 = vmatprep.subr.mxu0 %v397
    %993 = vmatpush1.msra.mxu0 %v396
    %994 = vmatprep.subr.mxu0 %v395
    %995 = vmatpush1.msra.mxu0 %v394
    %996 = vmatprep.subr.mxu0 %v393
    %997 = vmatpush1.msra.mxu0 %v392
    %998 = vmatprep.subr.mxu0 %v391
    %999 = vmatpush1.msra.mxu0 %v390
    %1000 = vmatprep.subr.mxu0 0.0
    %1001 = vmatpush2.msra.mxu0 0.0
    %1002 = vmatprep.subr.mxu0 0.0
    %1003 = vmatpush2.msra.mxu0 0.0
    %1004 = vmatprep.subr.mxu0 0.0
    %1005 = vmatpush2.msra.mxu0 0.0
    %1006 = vmatprep.subr.mxu0 0.0
    %1007 = vmatpush2.msra.mxu0 0.0
    %1008 = vmatprep.subr.mxu0 0.0
    %1009 = vmatpush2.msra.mxu0 0.0
    %1010 = vmatprep.subr.mxu0 0.0
    %1011 = vmatpush2.msra.mxu0 0.0
    %1012 = vmatprep.subr.mxu0 0.0
    %1013 = vmatpush2.msra.mxu0 0.0
    %1014 = vmatprep.subr.mxu0 0.0
    %1015 = vmatpush2.msra.mxu0 0.0
    %1016 = vmatprep.subr.mxu0 0.0
    %1017 = vmatpush2.msra.mxu0 0.0
    %1018 = vmatprep.subr.mxu0 0.0
    %1019 = vmatpush2.msra.mxu0 0.0
    %1020 = vmatprep.subr.mxu0 0.0
    %1021 = vmatpush2.msra.mxu0 0.0
    %1022 = vmatprep.subr.mxu0 0.0
    %1023 = vmatpush2.msra.mxu0 0.0
    %1024 = vmatprep.subr.mxu0 0.0
    %1025 = vmatpush2.msra.mxu0 0.0
    %1026 = vmatprep.subr.mxu0 0.0
    %1027 = vmatpush2.msra.mxu0 0.0
    %1028 = vmatprep.subr.mxu0 0.0
    %1029 = vmatpush2.msra.mxu0 0.0
    %1030 = vmatprep.subr.mxu0 0.0
    %1031 = vmatpush2.msra.mxu0 0.0
    %1032 = vmatprep.mubr.f32.mxu0 0.0
    %1033 = vmatmul.mubr.f32.gmra.mxu0 %v966
    %v1034 = vpop.f32.mrf.mxu0
    %v1035 = vadd.f32 0.0, %v1034
    %v1036 = vpop.f32.mrf.mxu0
    %v1037 = vadd.f32 0.0, %v1036
    %1038 = vdwg.mxu0
    %v1041 = vrot.slane %v1035, 6
    %v1042 = vrot.slane %v1037, 6
    %v1045 = vadd.f32 %v961, %v1041
    %v1046 = vadd.f32 %v962, %v1042
    %v1047 = vmul.f32 %v419, %v1045
    %v1048 = vmul.f32 %v420, %v1046
    %v1049 = vtanh.pop %v1047
    %v1050 = vtanh.pop %v1048
    %v1051 = vmul.f32 %v419, %v1049
    %v1052 = vmul.f32 %v420, %v1050
    %v1053 = vadd.f32 %v1051, %v421
    %v1054 = vadd.f32 %v1052, %v422
    %v1056 = vrot.slane %v954, 6
    %v1058 = vmul.f32 %v1053, %v1056
    %v1059 = vmul.f32 %v1053, %v1054
    %1061 = vrot.lane.b32.xlu0 %v1059, 64
    %v1062 = vpop.permute.xlu0 %1061
    %v1064 = vadd.f32 %v1058, %v1062
    %v1065 = vtanh.pop %v1064
    %v1066 = vmul.f32 %v1054, %v1065
    %v1068 = vrot.slane %v1066, 2
    %1069 = vrot.lane.b32.xlu0 %v1068, 64
    %v1070 = vpop.permute.xlu0 %1069
    %v1071 = vsel %vm436, %v1070, 0
    %1073 = vmatprep.subr.mxu0 0.0
    %1074 = vmatpush1.msra.mxu0 0.0
    %1075 = vmatprep.subr.mxu0 0.0
    %1076 = vmatpush1.msra.mxu0 0.0
    %1077 = vmatprep.subr.mxu0 0.0
    %1078 = vmatpush1.msra.mxu0 0.0
    %1079 = vmatprep.subr.mxu0 0.0
    %1080 = vmatpush1.msra.mxu0 0.0
    %1081 = vmatprep.subr.mxu0 0.0
    %1082 = vmatpush1.msra.mxu0 0.0
    %1083 = vmatprep.subr.mxu0 0.0
    %1084 = vmatpush1.msra.mxu0 0.0
    %1085 = vmatprep.subr.mxu0 0.0
    %1086 = vmatpush1.msra.mxu0 0.0
    %1087 = vmatprep.subr.mxu0 0.0
    %1088 = vmatpush1.msra.mxu0 0.0
    %1089 = vmatprep.subr.mxu0 %v405
    %1090 = vmatpush1.msra.mxu0 %v404
    %1091 = vmatprep.subr.mxu0 %v403
    %1092 = vmatpush1.msra.mxu0 %v402
    %1093 = vmatprep.subr.mxu0 %v401
    %1094 = vmatpush1.msra.mxu0 %v400
    %1095 = vmatprep.subr.mxu0 %v399
    %1096 = vmatpush1.msra.mxu0 %v398
    %1097 = vmatprep.subr.mxu0 %v397
    %1098 = vmatpush1.msra.mxu0 %v396
    %1099 = vmatprep.subr.mxu0 %v395
    %1100 = vmatpush1.msra.mxu0 %v394
    %1101 = vmatprep.subr.mxu0 %v393
    %1102 = vmatpush1.msra.mxu0 %v392
    %1103 = vmatprep.subr.mxu0 %v391
    %1104 = vmatpush1.msra.mxu0 %v390
    %1105 = vmatprep.subr.mxu0 0.0
    %1106 = vmatpush2.msra.mxu0 0.0
    %1107 = vmatprep.subr.mxu0 0.0
    %1108 = vmatpush2.msra.mxu0 0.0
    %1109 = vmatprep.subr.mxu0 0.0
    %1110 = vmatpush2.msra.mxu0 0.0
    %1111 = vmatprep.subr.mxu0 0.0
    %1112 = vmatpush2.msra.mxu0 0.0
    %1113 = vmatprep.subr.mxu0 0.0
    %1114 = vmatpush2.msra.mxu0 0.0
    %1115 = vmatprep.subr.mxu0 0.0
    %1116 = vmatpush2.msra.mxu0 0.0
    %1117 = vmatprep.subr.mxu0 0.0
    %1118 = vmatpush2.msra.mxu0 0.0
    %1119 = vmatprep.subr.mxu0 0.0
    %1120 = vmatpush2.msra.mxu0 0.0
    %1121 = vmatprep.subr.mxu0 0.0
    %1122 = vmatpush2.msra.mxu0 0.0
    %1123 = vmatprep.subr.mxu0 0.0
    %1124 = vmatpush2.msra.mxu0 0.0
    %1125 = vmatprep.subr.mxu0 0.0
    %1126 = vmatpush2.msra.mxu0 0.0
    %1127 = vmatprep.subr.mxu0 0.0
    %1128 = vmatpush2.msra.mxu0 0.0
    %1129 = vmatprep.subr.mxu0 0.0
    %1130 = vmatpush2.msra.mxu0 0.0
    %1131 = vmatprep.subr.mxu0 0.0
    %1132 = vmatpush2.msra.mxu0 0.0
    %1133 = vmatprep.subr.mxu0 0.0
    %1134 = vmatpush2.msra.mxu0 0.0
    %1135 = vmatprep.subr.mxu0 0.0
    %1136 = vmatpush2.msra.mxu0 0.0
    %1137 = vmatprep.mubr.f32.mxu0 0.0
    %1138 = vmatmul.mubr.f32.gmra.mxu0 %v1071
    %v1139 = vpop.f32.mrf.mxu0
    %v1140 = vadd.f32 0.0, %v1139
    %v1141 = vpop.f32.mrf.mxu0
    %v1142 = vadd.f32 0.0, %v1141
    %1143 = vdwg.mxu0
    %v1146 = vrot.slane %v1140, 4
    %v1147 = vrot.slane %v1142, 4
    %v1150 = vadd.f32 %v856, %v1146
    %v1151 = vadd.f32 %v857, %v1147
    %v1152 = vmul.f32 %v419, %v1150
    %v1153 = vmul.f32 %v420, %v1151
    %v1154 = vtanh.pop %v1152
    %v1155 = vtanh.pop %v1153
    %v1156 = vmul.f32 %v419, %v1154
    %v1157 = vmul.f32 %v420, %v1155
    %v1158 = vadd.f32 %v1156, %v421
    %v1159 = vadd.f32 %v1157, %v422
    %v1161 = vrot.slane %v1064, 6
    %v1163 = vmul.f32 %v1158, %v1161
    %v1164 = vmul.f32 %v1158, %v1159
    %1166 = vrot.lane.b32.xlu0 %v1164, 64
    %v1167 = vpop.permute.xlu0 %1166
    %v1169 = vadd.f32 %v1163, %v1167
    %v1170 = vtanh.pop %v1169
    %v1171 = vmul.f32 %v1159, %v1170
    %v1173 = vrot.slane %v1171, 4
    %1174 = vrot.lane.b32.xlu0 %v1173, 64
    %v1175 = vpop.permute.xlu0 %1174
    %v1176 = vsel %vm436, %v1175, 0
    %1178 = vmatprep.subr.mxu0 0.0
    %1179 = vmatpush1.msra.mxu0 0.0
    %1180 = vmatprep.subr.mxu0 0.0
    %1181 = vmatpush1.msra.mxu0 0.0
    %1182 = vmatprep.subr.mxu0 0.0
    %1183 = vmatpush1.msra.mxu0 0.0
    %1184 = vmatprep.subr.mxu0 0.0
    %1185 = vmatpush1.msra.mxu0 0.0
    %1186 = vmatprep.subr.mxu0 0.0
    %1187 = vmatpush1.msra.mxu0 0.0
    %1188 = vmatprep.subr.mxu0 0.0
    %1189 = vmatpush1.msra.mxu0 0.0
    %1190 = vmatprep.subr.mxu0 0.0
    %1191 = vmatpush1.msra.mxu0 0.0
    %1192 = vmatprep.subr.mxu0 0.0
    %1193 = vmatpush1.msra.mxu0 0.0
    %1194 = vmatprep.subr.mxu0 %v405
    %1195 = vmatpush1.msra.mxu0 %v404
    %1196 = vmatprep.subr.mxu0 %v403
    %1197 = vmatpush1.msra.mxu0 %v402
    %1198 = vmatprep.subr.mxu0 %v401
    %1199 = vmatpush1.msra.mxu0 %v400
    %1200 = vmatprep.subr.mxu0 %v399
    %1201 = vmatpush1.msra.mxu0 %v398
    %1202 = vmatprep.subr.mxu0 %v397
    %1203 = vmatpush1.msra.mxu0 %v396
    %1204 = vmatprep.subr.mxu0 %v395
    %1205 = vmatpush1.msra.mxu0 %v394
    %1206 = vmatprep.subr.mxu0 %v393
    %1207 = vmatpush1.msra.mxu0 %v392
    %1208 = vmatprep.subr.mxu0 %v391
    %1209 = vmatpush1.msra.mxu0 %v390
    %1210 = vmatprep.subr.mxu0 0.0
    %1211 = vmatpush2.msra.mxu0 0.0
    %1212 = vmatprep.subr.mxu0 0.0
    %1213 = vmatpush2.msra.mxu0 0.0
    %1214 = vmatprep.subr.mxu0 0.0
    %1215 = vmatpush2.msra.mxu0 0.0
    %1216 = vmatprep.subr.mxu0 0.0
    %1217 = vmatpush2.msra.mxu0 0.0
    %1218 = vmatprep.subr.mxu0 0.0
    %1219 = vmatpush2.msra.mxu0 0.0
    %1220 = vmatprep.subr.mxu0 0.0
    %1221 = vmatpush2.msra.mxu0 0.0
    %1222 = vmatprep.subr.mxu0 0.0
    %1223 = vmatpush2.msra.mxu0 0.0
    %1224 = vmatprep.subr.mxu0 0.0
    %1225 = vmatpush2.msra.mxu0 0.0
    %1226 = vmatprep.subr.mxu0 0.0
    %1227 = vmatpush2.msra.mxu0 0.0
    %1228 = vmatprep.subr.mxu0 0.0
    %1229 = vmatpush2.msra.mxu0 0.0
    %1230 = vmatprep.subr.mxu0 0.0
    %1231 = vmatpush2.msra.mxu0 0.0
    %1232 = vmatprep.subr.mxu0 0.0
    %1233 = vmatpush2.msra.mxu0 0.0
    %1234 = vmatprep.subr.mxu0 0.0
    %1235 = vmatpush2.msra.mxu0 0.0
    %1236 = vmatprep.subr.mxu0 0.0
    %1237 = vmatpush2.msra.mxu0 0.0
    %1238 = vmatprep.subr.mxu0 0.0
    %1239 = vmatpush2.msra.mxu0 0.0
    %1240 = vmatprep.subr.mxu0 0.0
    %1241 = vmatpush2.msra.mxu0 0.0
    %1242 = vmatprep.mubr.f32.mxu0 0.0
    %1243 = vmatmul.mubr.f32.gmra.mxu0 %v1176
    %v1244 = vpop.f32.mrf.mxu0
    %v1245 = vadd.f32 0.0, %v1244
    %v1246 = vpop.f32.mrf.mxu0
    %v1247 = vadd.f32 0.0, %v1246
    %1248 = vdwg.mxu0
    %v1251 = vrot.slane %v1245, 2
    %v1252 = vrot.slane %v1247, 2
    %v1255 = vadd.f32 %v961, %v1251
    %v1256 = vadd.f32 %v962, %v1252
    %v1257 = vmul.f32 %v419, %v1255
    %v1258 = vmul.f32 %v420, %v1256
    %v1259 = vtanh.pop %v1257
    %v1260 = vtanh.pop %v1258
    %v1261 = vmul.f32 %v419, %v1259
    %v1262 = vmul.f32 %v420, %v1260
    %v1263 = vadd.f32 %v1261, %v421
    %v1264 = vadd.f32 %v1262, %v422
    %v1266 = vrot.slane %v1169, 6
    %v1268 = vmul.f32 %v1263, %v1266
    %v1269 = vmul.f32 %v1263, %v1264
    %1271 = vrot.lane.b32.xlu0 %v1269, 64
    %v1272 = vpop.permute.xlu0 %1271
    %v1274 = vadd.f32 %v1268, %v1272
    %v1275 = vtanh.pop %v1274
    %v1276 = vmul.f32 %v1264, %v1275
    %v1277 = vld [vmem:[%s6] sm:$0xff]
    %v1278 = vld [vmem:[%s6 + $0x8] sm:$0xff]
    %v1279 = vld [vmem:[%s6 + $0x10] sm:$0xff]
    %v1280 = vld [vmem:[%s6 + $0x18] sm:$0xff]
    %v1281 = vld [vmem:[%s6 + $0x20] sm:$0xff]
    %v1282 = vld [vmem:[%s6 + $0x28] sm:$0xff]
    %v1283 = vld [vmem:[%s6 + $0x30] sm:$0xff]
    %v1284 = vld [vmem:[%s6 + $0x38] sm:$0xff]
    %v1285 = vld [vmem:[#allocation10] sm:$0x1]
    %v1287 = vlaneseq
    %v1288 = vshrl.u32 %v1287, 7
    %v1289 = vsub.s32 0, %v1288
    %v1290 = vrot.slane %v1285, %v1289
    %v1293 = vrot.slane %v1276, 6
    %1294 = vrot.lane.b32.xlu0 %v1293, 64
    %v1295 = vpop.permute.xlu0 %1294
    %v1296 = vsel %vm436, %v1295, 0
    %1298 = vmatprep.subr.mxu0 0.0
    %1299 = vmatpush1.msra.mxu0 0.0
    %1300 = vmatprep.subr.mxu0 0.0
    %1301 = vmatpush1.msra.mxu0 0.0
    %1302 = vmatprep.subr.mxu0 0.0
    %1303 = vmatpush1.msra.mxu0 0.0
    %1304 = vmatprep.subr.mxu0 0.0
    %1305 = vmatpush1.msra.mxu0 0.0
    %1306 = vmatprep.subr.mxu0 0.0
    %1307 = vmatpush1.msra.mxu0 0.0
    %1308 = vmatprep.subr.mxu0 0.0
    %1309 = vmatpush1.msra.mxu0 0.0
    %1310 = vmatprep.subr.mxu0 0.0
    %1311 = vmatpush1.msra.mxu0 0.0
    %1312 = vmatprep.subr.mxu0 0.0
    %1313 = vmatpush1.msra.mxu0 0.0
    %1314 = vmatprep.subr.mxu0 0.0
    %1315 = vmatpush1.msra.mxu0 %v1284
    %1316 = vmatprep.subr.mxu0 0.0
    %1317 = vmatpush1.msra.mxu0 %v1283
    %1318 = vmatprep.subr.mxu0 0.0
    %1319 = vmatpush1.msra.mxu0 %v1282
    %1320 = vmatprep.subr.mxu0 0.0
    %1321 = vmatpush1.msra.mxu0 %v1281
    %1322 = vmatprep.subr.mxu0 0.0
    %1323 = vmatpush1.msra.mxu0 %v1280
    %1324 = vmatprep.subr.mxu0 0.0
    %1325 = vmatpush1.msra.mxu0 %v1279
    %1326 = vmatprep.subr.mxu0 0.0
    %1327 = vmatpush1.msra.mxu0 %v1278
    %1328 = vmatprep.subr.mxu0 0.0
    %1329 = vmatpush1.msra.mxu0 %v1277
    %1330 = vmatprep.subr.mxu0 0.0
    %1331 = vmatpush2.msra.mxu0 0.0
    %1332 = vmatprep.subr.mxu0 0.0
    %1333 = vmatpush2.msra.mxu0 0.0
    %1334 = vmatprep.subr.mxu0 0.0
    %1335 = vmatpush2.msra.mxu0 0.0
    %1336 = vmatprep.subr.mxu0 0.0
    %1337 = vmatpush2.msra.mxu0 0.0
    %1338 = vmatprep.subr.mxu0 0.0
    %1339 = vmatpush2.msra.mxu0 0.0
    %1340 = vmatprep.subr.mxu0 0.0
    %1341 = vmatpush2.msra.mxu0 0.0
    %1342 = vmatprep.subr.mxu0 0.0
    %1343 = vmatpush2.msra.mxu0 0.0
    %1344 = vmatprep.subr.mxu0 0.0
    %1345 = vmatpush2.msra.mxu0 0.0
    %1346 = vmatprep.subr.mxu0 0.0
    %1347 = vmatpush2.msra.mxu0 0.0
    %1348 = vmatprep.subr.mxu0 0.0
    %1349 = vmatpush2.msra.mxu0 0.0
    %1350 = vmatprep.subr.mxu0 0.0
    %1351 = vmatpush2.msra.mxu0 0.0
    %1352 = vmatprep.subr.mxu0 0.0
    %1353 = vmatpush2.msra.mxu0 0.0
    %1354 = vmatprep.subr.mxu0 0.0
    %1355 = vmatpush2.msra.mxu0 0.0
    %1356 = vmatprep.subr.mxu0 0.0
    %1357 = vmatpush2.msra.mxu0 0.0
    %1358 = vmatprep.subr.mxu0 0.0
    %1359 = vmatpush2.msra.mxu0 0.0
    %1360 = vmatprep.subr.mxu0 0.0
    %1361 = vmatpush2.msra.mxu0 0.0
    %1362 = vmatprep.mubr.f32.mxu0 0.0
    %1363 = vmatmul.mubr.f32.gmra.mxu0 %v1296
    %v1364 = vpop.f32.mrf.mxu0
    %v1365 = vadd.f32 %v1290, %v1364
    %v1366 = vpop.f32.mrf.mxu0
    %1367 = vdwg.mxu0
    %v1368 = vmul.f32 %v1365, 0.5
    %v1369 = vmul.f32 %v1368, 1.442695
    %v1370 = vpow.pop %v1369
    %v1371 = vld [vmem:[%s1] sm:$0x3]
    %1373 = vrot.lane.b32.xlu0 %v1371, 16
    %v1374 = vpop.permute.xlu0 %1373
    %v1376 = vmul.f32 %v1370, %v1374
    %1378 = vrot.lane.b32.xlu0 %v1365, 16
    %v1379 = vpop.permute.xlu0 %1378
    %v1381 = vadd.f32 %v1376, %v1379
    %1383 = vrot.lane.b32.xlu0 %v1381, 16
    %v1384 = vpop.permute.xlu0 %1383
    %vm1386 = vcmask 261120
    %v1387 = vsel %vm1386, %v1365, %v1384
    %vm1388 = vcmask 386048
    %1389 = vst.msk [vmem:[%s10] sm:$0x3] %vm1388, %v1387
    %v1390 = vld [vmem:[#allocation7] sm:$0xff]
    %v1391 = vld [vmem:[#allocation7 + $0x8] sm:$0xff]
    %v1392 = vld [vmem:[#allocation10] sm:$0x1]
    %v1394 = vlaneseq
    %v1395 = vshrl.u32 %v1394, 7
    %v1396 = vsub.s32 0, %v1395
    %v1397 = vrot.slane %v1392, %v1396
    %1398 = vrot.lane.b32.xlu0 %v1381, 112
    %v1399 = vpop.permute.xlu0 %1398
    %1400 = vrot.lane.b32.xlu0 %v1397, 96
    %v1401 = vpop.permute.xlu0 %1400
    %v1403 = vsel %vm154, %v1399, 0
    %1405 = vmatprep.subr.mxu0 0.0
    %1406 = vmatpush1.msra.mxu0 0.0
    %1407 = vmatprep.subr.mxu0 0.0
    %1408 = vmatpush1.msra.mxu0 0.0
    %1409 = vmatprep.subr.mxu0 0.0
    %1410 = vmatpush1.msra.mxu0 0.0
    %1411 = vmatprep.subr.mxu0 0.0
    %1412 = vmatpush1.msra.mxu0 0.0
    %1413 = vmatprep.subr.mxu0 0.0
    %1414 = vmatpush1.msra.mxu0 0.0
    %1415 = vmatprep.subr.mxu0 0.0
    %1416 = vmatpush1.msra.mxu0 0.0
    %1417 = vmatprep.subr.mxu0 0.0
    %1418 = vmatpush1.msra.mxu0 0.0
    %1419 = vmatprep.subr.mxu0 0.0
    %1420 = vmatpush1.msra.mxu0 0.0
    %1421 = vmatprep.subr.mxu0 0.0
    %1422 = vmatpush1.msra.mxu0 0.0
    %1423 = vmatprep.subr.mxu0 0.0
    %1424 = vmatpush1.msra.mxu0 0.0
    %1425 = vmatprep.subr.mxu0 0.0
    %1426 = vmatpush1.msra.mxu0 0.0
    %1427 = vmatprep.subr.mxu0 0.0
    %1428 = vmatpush1.msra.mxu0 0.0
    %1429 = vmatprep.subr.mxu0 0.0
    %1430 = vmatpush1.msra.mxu0 0.0
    %1431 = vmatprep.subr.mxu0 0.0
    %1432 = vmatpush1.msra.mxu0 0.0
    %1433 = vmatprep.subr.mxu0 0.0
    %1434 = vmatpush1.msra.mxu0 %v1391
    %1435 = vmatprep.subr.mxu0 0.0
    %1436 = vmatpush1.msra.mxu0 %v1390
    %1437 = vmatprep.subr.mxu0 0.0
    %1438 = vmatpush2.msra.mxu0 0.0
    %1439 = vmatprep.subr.mxu0 0.0
    %1440 = vmatpush2.msra.mxu0 0.0
    %1441 = vmatprep.subr.mxu0 0.0
    %1442 = vmatpush2.msra.mxu0 0.0
    %1443 = vmatprep.subr.mxu0 0.0
    %1444 = vmatpush2.msra.mxu0 0.0
    %1445 = vmatprep.subr.mxu0 0.0
    %1446 = vmatpush2.msra.mxu0 0.0
    %1447 = vmatprep.subr.mxu0 0.0
    %1448 = vmatpush2.msra.mxu0 0.0
    %1449 = vmatprep.subr.mxu0 0.0
    %1450 = vmatpush2.msra.mxu0 0.0
    %1451 = vmatprep.subr.mxu0 0.0
    %1452 = vmatpush2.msra.mxu0 0.0
    %1453 = vmatprep.subr.mxu0 0.0
    %1454 = vmatpush2.msra.mxu0 0.0
    %1455 = vmatprep.subr.mxu0 0.0
    %1456 = vmatpush2.msra.mxu0 0.0
    %1457 = vmatprep.subr.mxu0 0.0
    %1458 = vmatpush2.msra.mxu0 0.0
    %1459 = vmatprep.subr.mxu0 0.0
    %1460 = vmatpush2.msra.mxu0 0.0
    %1461 = vmatprep.subr.mxu0 0.0
    %1462 = vmatpush2.msra.mxu0 0.0
    %1463 = vmatprep.subr.mxu0 0.0
    %1464 = vmatpush2.msra.mxu0 0.0
    %1465 = vmatprep.subr.mxu0 0.0
    %1466 = vmatpush2.msra.mxu0 0.0
    %1467 = vmatprep.subr.mxu0 0.0
    %1468 = vmatpush2.msra.mxu0 0.0
    %1469 = vmatprep.mubr.f32.mxu0 0.0
    %1470 = vmatmul.mubr.f32.gmra.mxu0 %v1403
    %v1471 = vpop.f32.mrf.mxu0
    %v1472 = vadd.f32 %v1401, %v1471
    %v1473 = vpop.f32.mrf.mxu0
    %1474 = vdwg.mxu0
    %v1475 = vtanh.pop %v1472
    %v1476 = vld [vmem:[#allocation4 + $0x4] sm:$0x1]
    %v1478 = vlaneseq
    %v1479 = vshrl.u32 %v1478, 7
    %v1480 = vsub.s32 0, %v1479
    %v1481 = vrot.slane %v1476, %v1480
    %v1483 = vadd.f32 %v1481, 0.0
    %v1485 = vsel %vm1386, %v1475, 0
    %1487 = vmatprep.subr.mxu0 0.0
    %1488 = vmatpush1.msra.mxu0 0.0
    %1489 = vmatprep.subr.mxu0 0.0
    %1490 = vmatpush1.msra.mxu0 0.0
    %1491 = vmatprep.subr.mxu0 0.0
    %1492 = vmatpush1.msra.mxu0 0.0
    %1493 = vmatprep.subr.mxu0 0.0
    %1494 = vmatpush1.msra.mxu0 0.0
    %1495 = vmatprep.subr.mxu0 0.0
    %1496 = vmatpush1.msra.mxu0 0.0
    %1497 = vmatprep.subr.mxu0 0.0
    %1498 = vmatpush1.msra.mxu0 0.0
    %1499 = vmatprep.subr.mxu0 0.0
    %1500 = vmatpush1.msra.mxu0 0.0
    %1501 = vmatprep.subr.mxu0 0.0
    %1502 = vmatpush1.msra.mxu0 0.0
    %1503 = vmatprep.subr.mxu0 0.0
    %1504 = vmatpush1.msra.mxu0 0.0
    %1505 = vmatprep.subr.mxu0 0.0
    %1506 = vmatpush1.msra.mxu0 0.0
    %1507 = vmatprep.subr.mxu0 0.0
    %1508 = vmatpush1.msra.mxu0 0.0
    %1509 = vmatprep.subr.mxu0 0.0
    %1510 = vmatpush1.msra.mxu0 0.0
    %1511 = vmatprep.subr.mxu0 0.0
    %1512 = vmatpush1.msra.mxu0 %v409
    %1513 = vmatprep.subr.mxu0 0.0
    %1514 = vmatpush1.msra.mxu0 %v408
    %1515 = vmatprep.subr.mxu0 0.0
    %1516 = vmatpush1.msra.mxu0 %v407
    %1517 = vmatprep.subr.mxu0 0.0
    %1518 = vmatpush1.msra.mxu0 %v406
    %1519 = vmatprep.subr.mxu0 0.0
    %1520 = vmatpush2.msra.mxu0 0.0
    %1521 = vmatprep.subr.mxu0 0.0
    %1522 = vmatpush2.msra.mxu0 0.0
    %1523 = vmatprep.subr.mxu0 0.0
    %1524 = vmatpush2.msra.mxu0 0.0
    %1525 = vmatprep.subr.mxu0 0.0
    %1526 = vmatpush2.msra.mxu0 0.0
    %1527 = vmatprep.subr.mxu0 0.0
    %1528 = vmatpush2.msra.mxu0 0.0
    %1529 = vmatprep.subr.mxu0 0.0
    %1530 = vmatpush2.msra.mxu0 0.0
    %1531 = vmatprep.subr.mxu0 0.0
    %1532 = vmatpush2.msra.mxu0 0.0
    %1533 = vmatprep.subr.mxu0 0.0
    %1534 = vmatpush2.msra.mxu0 0.0
    %1535 = vmatprep.subr.mxu0 0.0
    %1536 = vmatpush2.msra.mxu0 0.0
    %1537 = vmatprep.subr.mxu0 0.0
    %1538 = vmatpush2.msra.mxu0 0.0
    %1539 = vmatprep.subr.mxu0 0.0
    %1540 = vmatpush2.msra.mxu0 0.0
    %1541 = vmatprep.subr.mxu0 0.0
    %1542 = vmatpush2.msra.mxu0 0.0
    %1543 = vmatprep.subr.mxu0 0.0
    %1544 = vmatpush2.msra.mxu0 0.0
    %1545 = vmatprep.subr.mxu0 0.0
    %1546 = vmatpush2.msra.mxu0 0.0
    %1547 = vmatprep.subr.mxu0 0.0
    %1548 = vmatpush2.msra.mxu0 0.0
    %1549 = vmatprep.subr.mxu0 0.0
    %1550 = vmatpush2.msra.mxu0 0.0
    %1551 = vmatprep.mubr.f32.mxu0 0.0
    %1552 = vmatmul.mubr.f32.gmra.mxu0 %v1485
    %v1553 = vpop.f32.mrf.mxu0
    %v1554 = vadd.f32 0.0, %v1553
    %v1555 = vpop.f32.mrf.mxu0
    %1556 = vdwg.mxu0
    %v1557 = vadd.f32 %v1483, %v1554
    %v1558 = vmul.f32 %v426, %v1557
    %v1559 = vtanh.pop %v1558
    %v1560 = vmul.f32 %v426, %v1559
    %v1561 = vadd.f32 %v1560, %v427
    %v1562 = vmul.f32 %v1561, 0.0
    %1564 = vrot.lane.b32.xlu0 %v1561, 64
    %v1565 = vpop.permute.xlu0 %1564
    %v1567 = vmul.f32 %v1561, %v1565
    %1569 = vrot.lane.b32.xlu0 %v1567, 32
    %v1570 = vpop.permute.xlu0 %1569
    %v1572 = vadd.f32 %v1562, %v1570
    %v1573 = vtanh.pop %v1572
    %1575 = vrot.lane.b32.xlu0 %v1573, 64
    %v1576 = vpop.permute.xlu0 %1575
    %v1578 = vmul.f32 %v1561, %v1576
    %1580 = vrot.lane.b32.xlu0 %v1578, 32
    %v1581 = vpop.permute.xlu0 %1580
    %v1582 = vsel %vm1386, %v1581, 0
    %1584 = vmatprep.subr.mxu0 0.0
    %1585 = vmatpush1.msra.mxu0 0.0
    %1586 = vmatprep.subr.mxu0 0.0
    %1587 = vmatpush1.msra.mxu0 0.0
    %1588 = vmatprep.subr.mxu0 0.0
    %1589 = vmatpush1.msra.mxu0 0.0
    %1590 = vmatprep.subr.mxu0 0.0
    %1591 = vmatpush1.msra.mxu0 0.0
    %1592 = vmatprep.subr.mxu0 0.0
    %1593 = vmatpush1.msra.mxu0 0.0
    %1594 = vmatprep.subr.mxu0 0.0
    %1595 = vmatpush1.msra.mxu0 0.0
    %1596 = vmatprep.subr.mxu0 0.0
    %1597 = vmatpush1.msra.mxu0 0.0
    %1598 = vmatprep.subr.mxu0 0.0
    %1599 = vmatpush1.msra.mxu0 0.0
    %1600 = vmatprep.subr.mxu0 0.0
    %1601 = vmatpush1.msra.mxu0 0.0
    %1602 = vmatprep.subr.mxu0 0.0
    %1603 = vmatpush1.msra.mxu0 0.0
    %1604 = vmatprep.subr.mxu0 0.0
    %1605 = vmatpush1.msra.mxu0 0.0
    %1606 = vmatprep.subr.mxu0 0.0
    %1607 = vmatpush1.msra.mxu0 0.0
    %1608 = vmatprep.subr.mxu0 0.0
    %1609 = vmatpush1.msra.mxu0 %v409
    %1610 = vmatprep.subr.mxu0 0.0
    %1611 = vmatpush1.msra.mxu0 %v408
    %1612 = vmatprep.subr.mxu0 0.0
    %1613 = vmatpush1.msra.mxu0 %v407
    %1614 = vmatprep.subr.mxu0 0.0
    %1615 = vmatpush1.msra.mxu0 %v406
    %1616 = vmatprep.subr.mxu0 0.0
    %1617 = vmatpush2.msra.mxu0 0.0
    %1618 = vmatprep.subr.mxu0 0.0
    %1619 = vmatpush2.msra.mxu0 0.0
    %1620 = vmatprep.subr.mxu0 0.0
    %1621 = vmatpush2.msra.mxu0 0.0
    %1622 = vmatprep.subr.mxu0 0.0
    %1623 = vmatpush2.msra.mxu0 0.0
    %1624 = vmatprep.subr.mxu0 0.0
    %1625 = vmatpush2.msra.mxu0 0.0
    %1626 = vmatprep.subr.mxu0 0.0
    %1627 = vmatpush2.msra.mxu0 0.0
    %1628 = vmatprep.subr.mxu0 0.0
    %1629 = vmatpush2.msra.mxu0 0.0
    %1630 = vmatprep.subr.mxu0 0.0
    %1631 = vmatpush2.msra.mxu0 0.0
    %1632 = vmatprep.subr.mxu0 0.0
    %1633 = vmatpush2.msra.mxu0 0.0
    %1634 = vmatprep.subr.mxu0 0.0
    %1635 = vmatpush2.msra.mxu0 0.0
    %1636 = vmatprep.subr.mxu0 0.0
    %1637 = vmatpush2.msra.mxu0 0.0
    %1638 = vmatprep.subr.mxu0 0.0
    %1639 = vmatpush2.msra.mxu0 0.0
    %1640 = vmatprep.subr.mxu0 0.0
    %1641 = vmatpush2.msra.mxu0 0.0
    %1642 = vmatprep.subr.mxu0 0.0
    %1643 = vmatpush2.msra.mxu0 0.0
    %1644 = vmatprep.subr.mxu0 0.0
    %1645 = vmatpush2.msra.mxu0 0.0
    %1646 = vmatprep.subr.mxu0 0.0
    %1647 = vmatpush2.msra.mxu0 0.0
    %1648 = vmatprep.mubr.f32.mxu0 0.0
    %1649 = vmatmul.mubr.f32.gmra.mxu0 %v1582
    %v1650 = vpop.f32.mrf.mxu0
    %v1651 = vadd.f32 0.0, %v1650
    %v1652 = vpop.f32.mrf.mxu0
    %1653 = vdwg.mxu0
    %v1654 = vadd.f32 %v382, %v1651
    %v1655 = vmul.f32 %v426, %v1654
    %v1656 = vtanh.pop %v1655
    %v1657 = vmul.f32 %v426, %v1656
    %v1658 = vadd.f32 %v1657, %v427
    %v1659 = vmul.f32 %v1658, %v1572
    %1661 = vrot.lane.b32.xlu0 %v1658, 64
    %v1662 = vpop.permute.xlu0 %1661
    %v1664 = vmul.f32 %v1658, %v1662
    %1666 = vrot.lane.b32.xlu0 %v1664, 32
    %v1667 = vpop.permute.xlu0 %1666
    %v1669 = vadd.f32 %v1659, %v1667
    %v1670 = vtanh.pop %v1669
    %1672 = vrot.lane.b32.xlu0 %v1670, 64
    %v1673 = vpop.permute.xlu0 %1672
    %v1675 = vmul.f32 %v1658, %v1673
    %1677 = vrot.lane.b32.xlu0 %v1675, 32
    %v1678 = vpop.permute.xlu0 %1677
    %v1679 = vsel %vm1386, %v1678, 0
    %1681 = vmatprep.subr.mxu0 0.0
    %1682 = vmatpush1.msra.mxu0 0.0
    %1683 = vmatprep.subr.mxu0 0.0
    %1684 = vmatpush1.msra.mxu0 0.0
    %1685 = vmatprep.subr.mxu0 0.0
    %1686 = vmatpush1.msra.mxu0 0.0
    %1687 = vmatprep.subr.mxu0 0.0
    %1688 = vmatpush1.msra.mxu0 0.0
    %1689 = vmatprep.subr.mxu0 0.0
    %1690 = vmatpush1.msra.mxu0 0.0
    %1691 = vmatprep.subr.mxu0 0.0
    %1692 = vmatpush1.msra.mxu0 0.0
    %1693 = vmatprep.subr.mxu0 0.0
    %1694 = vmatpush1.msra.mxu0 0.0
    %1695 = vmatprep.subr.mxu0 0.0
    %1696 = vmatpush1.msra.mxu0 0.0
    %1697 = vmatprep.subr.mxu0 0.0
    %1698 = vmatpush1.msra.mxu0 0.0
    %1699 = vmatprep.subr.mxu0 0.0
    %1700 = vmatpush1.msra.mxu0 0.0
    %1701 = vmatprep.subr.mxu0 0.0
    %1702 = vmatpush1.msra.mxu0 0.0
    %1703 = vmatprep.subr.mxu0 0.0
    %1704 = vmatpush1.msra.mxu0 0.0
    %1705 = vmatprep.subr.mxu0 0.0
    %1706 = vmatpush1.msra.mxu0 %v409
    %1707 = vmatprep.subr.mxu0 0.0
    %1708 = vmatpush1.msra.mxu0 %v408
    %1709 = vmatprep.subr.mxu0 0.0
    %1710 = vmatpush1.msra.mxu0 %v407
    %1711 = vmatprep.subr.mxu0 0.0
    %1712 = vmatpush1.msra.mxu0 %v406
    %1713 = vmatprep.subr.mxu0 0.0
    %1714 = vmatpush2.msra.mxu0 0.0
    %1715 = vmatprep.subr.mxu0 0.0
    %1716 = vmatpush2.msra.mxu0 0.0
    %1717 = vmatprep.subr.mxu0 0.0
    %1718 = vmatpush2.msra.mxu0 0.0
    %1719 = vmatprep.subr.mxu0 0.0
    %1720 = vmatpush2.msra.mxu0 0.0
    %1721 = vmatprep.subr.mxu0 0.0
    %1722 = vmatpush2.msra.mxu0 0.0
    %1723 = vmatprep.subr.mxu0 0.0
    %1724 = vmatpush2.msra.mxu0 0.0
    %1725 = vmatprep.subr.mxu0 0.0
    %1726 = vmatpush2.msra.mxu0 0.0
    %1727 = vmatprep.subr.mxu0 0.0
    %1728 = vmatpush2.msra.mxu0 0.0
    %1729 = vmatprep.subr.mxu0 0.0
    %1730 = vmatpush2.msra.mxu0 0.0
    %1731 = vmatprep.subr.mxu0 0.0
    %1732 = vmatpush2.msra.mxu0 0.0
    %1733 = vmatprep.subr.mxu0 0.0
    %1734 = vmatpush2.msra.mxu0 0.0
    %1735 = vmatprep.subr.mxu0 0.0
    %1736 = vmatpush2.msra.mxu0 0.0
    %1737 = vmatprep.subr.mxu0 0.0
    %1738 = vmatpush2.msra.mxu0 0.0
    %1739 = vmatprep.subr.mxu0 0.0
    %1740 = vmatpush2.msra.mxu0 0.0
    %1741 = vmatprep.subr.mxu0 0.0
    %1742 = vmatpush2.msra.mxu0 0.0
    %1743 = vmatprep.subr.mxu0 0.0
    %1744 = vmatpush2.msra.mxu0 0.0
    %1745 = vmatprep.mubr.f32.mxu0 0.0
    %1746 = vmatmul.mubr.f32.gmra.mxu0 %v1679
    %v1747 = vpop.f32.mrf.mxu0
    %v1748 = vadd.f32 0.0, %v1747
    %v1749 = vpop.f32.mrf.mxu0
    %1750 = vdwg.mxu0
    %v1752 = vrot.slane %v1748, 6
    %v1754 = vadd.f32 %v382, %v1752
    %v1755 = vmul.f32 %v426, %v1754
    %v1756 = vtanh.pop %v1755
    %v1757 = vmul.f32 %v426, %v1756
    %v1758 = vadd.f32 %v1757, %v427
    %v1760 = vrot.slane %v1669, 6
    %v1762 = vmul.f32 %v1758, %v1760
    %1764 = vrot.lane.b32.xlu0 %v1758, 64
    %v1765 = vpop.permute.xlu0 %1764
    %v1767 = vmul.f32 %v1758, %v1765
    %1769 = vrot.lane.b32.xlu0 %v1767, 32
    %v1770 = vpop.permute.xlu0 %1769
    %v1772 = vadd.f32 %v1762, %v1770
    %v1773 = vtanh.pop %v1772
    %1775 = vrot.lane.b32.xlu0 %v1773, 64
    %v1776 = vpop.permute.xlu0 %1775
    %v1778 = vmul.f32 %v1758, %v1776
    %v1780 = vrot.slane %v1778, 2
    %1781 = vrot.lane.b32.xlu0 %v1780, 32
    %v1782 = vpop.permute.xlu0 %1781
    %v1783 = vsel %vm1386, %v1782, 0
    %1785 = vmatprep.subr.mxu0 0.0
    %1786 = vmatpush1.msra.mxu0 0.0
    %1787 = vmatprep.subr.mxu0 0.0
    %1788 = vmatpush1.msra.mxu0 0.0
    %1789 = vmatprep.subr.mxu0 0.0
    %1790 = vmatpush1.msra.mxu0 0.0
    %1791 = vmatprep.subr.mxu0 0.0
    %1792 = vmatpush1.msra.mxu0 0.0
    %1793 = vmatprep.subr.mxu0 0.0
    %1794 = vmatpush1.msra.mxu0 0.0
    %1795 = vmatprep.subr.mxu0 0.0
    %1796 = vmatpush1.msra.mxu0 0.0
    %1797 = vmatprep.subr.mxu0 0.0
    %1798 = vmatpush1.msra.mxu0 0.0
    %1799 = vmatprep.subr.mxu0 0.0
    %1800 = vmatpush1.msra.mxu0 0.0
    %1801 = vmatprep.subr.mxu0 0.0
    %1802 = vmatpush1.msra.mxu0 0.0
    %1803 = vmatprep.subr.mxu0 0.0
    %1804 = vmatpush1.msra.mxu0 0.0
    %1805 = vmatprep.subr.mxu0 0.0
    %1806 = vmatpush1.msra.mxu0 0.0
    %1807 = vmatprep.subr.mxu0 0.0
    %1808 = vmatpush1.msra.mxu0 0.0
    %1809 = vmatprep.subr.mxu0 0.0
    %1810 = vmatpush1.msra.mxu0 %v409
    %1811 = vmatprep.subr.mxu0 0.0
    %1812 = vmatpush1.msra.mxu0 %v408
    %1813 = vmatprep.subr.mxu0 0.0
    %1814 = vmatpush1.msra.mxu0 %v407
    %1815 = vmatprep.subr.mxu0 0.0
    %1816 = vmatpush1.msra.mxu0 %v406
    %1817 = vmatprep.subr.mxu0 0.0
    %1818 = vmatpush2.msra.mxu0 0.0
    %1819 = vmatprep.subr.mxu0 0.0
    %1820 = vmatpush2.msra.mxu0 0.0
    %1821 = vmatprep.subr.mxu0 0.0
    %1822 = vmatpush2.msra.mxu0 0.0
    %1823 = vmatprep.subr.mxu0 0.0
    %1824 = vmatpush2.msra.mxu0 0.0
    %1825 = vmatprep.subr.mxu0 0.0
    %1826 = vmatpush2.msra.mxu0 0.0
    %1827 = vmatprep.subr.mxu0 0.0
    %1828 = vmatpush2.msra.mxu0 0.0
    %1829 = vmatprep.subr.mxu0 0.0
    %1830 = vmatpush2.msra.mxu0 0.0
    %1831 = vmatprep.subr.mxu0 0.0
    %1832 = vmatpush2.msra.mxu0 0.0
    %1833 = vmatprep.subr.mxu0 0.0
    %1834 = vmatpush2.msra.mxu0 0.0
    %1835 = vmatprep.subr.mxu0 0.0
    %1836 = vmatpush2.msra.mxu0 0.0
    %1837 = vmatprep.subr.mxu0 0.0
    %1838 = vmatpush2.msra.mxu0 0.0
    %1839 = vmatprep.subr.mxu0 0.0
    %1840 = vmatpush2.msra.mxu0 0.0
    %1841 = vmatprep.subr.mxu0 0.0
    %1842 = vmatpush2.msra.mxu0 0.0
    %1843 = vmatprep.subr.mxu0 0.0
    %1844 = vmatpush2.msra.mxu0 0.0
    %1845 = vmatprep.subr.mxu0 0.0
    %1846 = vmatpush2.msra.mxu0 0.0
    %1847 = vmatprep.subr.mxu0 0.0
    %1848 = vmatpush2.msra.mxu0 0.0
    %1849 = vmatprep.mubr.f32.mxu0 0.0
    %1850 = vmatmul.mubr.f32.gmra.mxu0 %v1783
    %v1851 = vpop.f32.mrf.mxu0
    %v1852 = vadd.f32 0.0, %v1851
    %v1853 = vpop.f32.mrf.mxu0
    %1854 = vdwg.mxu0
    %v1856 = vrot.slane %v1852, 4
    %v1858 = vadd.f32 %v382, %v1856
    %v1859 = vmul.f32 %v426, %v1858
    %v1860 = vtanh.pop %v1859
    %v1861 = vmul.f32 %v426, %v1860
    %v1862 = vadd.f32 %v1861, %v427
    %v1864 = vrot.slane %v1772, 6
    %v1866 = vmul.f32 %v1862, %v1864
    %1868 = vrot.lane.b32.xlu0 %v1862, 64
    %v1869 = vpop.permute.xlu0 %1868
    %v1871 = vmul.f32 %v1862, %v1869
    %1873 = vrot.lane.b32.xlu0 %v1871, 32
    %v1874 = vpop.permute.xlu0 %1873
    %v1876 = vadd.f32 %v1866, %v1874
    %v1877 = vtanh.pop %v1876
    %1879 = vrot.lane.b32.xlu0 %v1877, 64
    %v1880 = vpop.permute.xlu0 %1879
    %v1882 = vmul.f32 %v1862, %v1880
    %v1884 = vrot.slane %v1882, 4
    %1885 = vrot.lane.b32.xlu0 %v1884, 32
    %v1886 = vpop.permute.xlu0 %1885
    %v1887 = vsel %vm1386, %v1886, 0
    %1889 = vmatprep.subr.mxu0 0.0
    %1890 = vmatpush1.msra.mxu0 0.0
    %1891 = vmatprep.subr.mxu0 0.0
    %1892 = vmatpush1.msra.mxu0 0.0
    %1893 = vmatprep.subr.mxu0 0.0
    %1894 = vmatpush1.msra.mxu0 0.0
    %1895 = vmatprep.subr.mxu0 0.0
    %1896 = vmatpush1.msra.mxu0 0.0
    %1897 = vmatprep.subr.mxu0 0.0
    %1898 = vmatpush1.msra.mxu0 0.0
    %1899 = vmatprep.subr.mxu0 0.0
    %1900 = vmatpush1.msra.mxu0 0.0
    %1901 = vmatprep.subr.mxu0 0.0
    %1902 = vmatpush1.msra.mxu0 0.0
    %1903 = vmatprep.subr.mxu0 0.0
    %1904 = vmatpush1.msra.mxu0 0.0
    %1905 = vmatprep.subr.mxu0 0.0
    %1906 = vmatpush1.msra.mxu0 0.0
    %1907 = vmatprep.subr.mxu0 0.0
    %1908 = vmatpush1.msra.mxu0 0.0
    %1909 = vmatprep.subr.mxu0 0.0
    %1910 = vmatpush1.msra.mxu0 0.0
    %1911 = vmatprep.subr.mxu0 0.0
    %1912 = vmatpush1.msra.mxu0 0.0
    %1913 = vmatprep.subr.mxu0 0.0
    %1914 = vmatpush1.msra.mxu0 %v409
    %1915 = vmatprep.subr.mxu0 0.0
    %1916 = vmatpush1.msra.mxu0 %v408
    %1917 = vmatprep.subr.mxu0 0.0
    %1918 = vmatpush1.msra.mxu0 %v407
    %1919 = vmatprep.subr.mxu0 0.0
    %1920 = vmatpush1.msra.mxu0 %v406
    %1921 = vmatprep.subr.mxu0 0.0
    %1922 = vmatpush2.msra.mxu0 0.0
    %1923 = vmatprep.subr.mxu0 0.0
    %1924 = vmatpush2.msra.mxu0 0.0
    %1925 = vmatprep.subr.mxu0 0.0
    %1926 = vmatpush2.msra.mxu0 0.0
    %1927 = vmatprep.subr.mxu0 0.0
    %1928 = vmatpush2.msra.mxu0 0.0
    %1929 = vmatprep.subr.mxu0 0.0
    %1930 = vmatpush2.msra.mxu0 0.0
    %1931 = vmatprep.subr.mxu0 0.0
    %1932 = vmatpush2.msra.mxu0 0.0
    %1933 = vmatprep.subr.mxu0 0.0
    %1934 = vmatpush2.msra.mxu0 0.0
    %1935 = vmatprep.subr.mxu0 0.0
    %1936 = vmatpush2.msra.mxu0 0.0
    %1937 = vmatprep.subr.mxu0 0.0
    %1938 = vmatpush2.msra.mxu0 0.0
    %1939 = vmatprep.subr.mxu0 0.0
    %1940 = vmatpush2.msra.mxu0 0.0
    %1941 = vmatprep.subr.mxu0 0.0
    %1942 = vmatpush2.msra.mxu0 0.0
    %1943 = vmatprep.subr.mxu0 0.0
    %1944 = vmatpush2.msra.mxu0 0.0
    %1945 = vmatprep.subr.mxu0 0.0
    %1946 = vmatpush2.msra.mxu0 0.0
    %1947 = vmatprep.subr.mxu0 0.0
    %1948 = vmatpush2.msra.mxu0 0.0
    %1949 = vmatprep.subr.mxu0 0.0
    %1950 = vmatpush2.msra.mxu0 0.0
    %1951 = vmatprep.subr.mxu0 0.0
    %1952 = vmatpush2.msra.mxu0 0.0
    %1953 = vmatprep.mubr.f32.mxu0 0.0
    %1954 = vmatmul.mubr.f32.gmra.mxu0 %v1887
    %v1955 = vpop.f32.mrf.mxu0
    %v1956 = vadd.f32 0.0, %v1955
    %v1957 = vpop.f32.mrf.mxu0
    %1958 = vdwg.mxu0
    %v1960 = vrot.slane %v1956, 2
    %v1962 = vadd.f32 %v382, %v1960
    %v1963 = vmul.f32 %v426, %v1962
    %v1964 = vtanh.pop %v1963
    %v1965 = vmul.f32 %v426, %v1964
    %v1966 = vadd.f32 %v1965, %v427
    %v1968 = vrot.slane %v1876, 6
    %v1970 = vmul.f32 %v1966, %v1968
    %1972 = vrot.lane.b32.xlu0 %v1966, 64
    %v1973 = vpop.permute.xlu0 %1972
    %v1975 = vmul.f32 %v1966, %v1973
    %1977 = vrot.lane.b32.xlu0 %v1975, 32
    %v1978 = vpop.permute.xlu0 %1977
    %v1980 = vadd.f32 %v1970, %v1978
    %v1981 = vtanh.pop %v1980
    %1983 = vrot.lane.b32.xlu0 %v1981, 64
    %v1984 = vpop.permute.xlu0 %1983
    %v1986 = vmul.f32 %v1966, %v1984
    %v1988 = vrot.slane %v1986, 6
    %1989 = vrot.lane.b32.xlu0 %v1988, 32
    %v1990 = vpop.permute.xlu0 %1989
    %v1991 = vsel %vm1386, %v1990, 0
    %1993 = vmatprep.subr.mxu0 0.0
    %1994 = vmatpush1.msra.mxu0 0.0
    %1995 = vmatprep.subr.mxu0 0.0
    %1996 = vmatpush1.msra.mxu0 0.0
    %1997 = vmatprep.subr.mxu0 0.0
    %1998 = vmatpush1.msra.mxu0 0.0
    %1999 = vmatprep.subr.mxu0 0.0
    %2000 = vmatpush1.msra.mxu0 0.0
    %2001 = vmatprep.subr.mxu0 0.0
    %2002 = vmatpush1.msra.mxu0 0.0
    %2003 = vmatprep.subr.mxu0 0.0
    %2004 = vmatpush1.msra.mxu0 0.0
    %2005 = vmatprep.subr.mxu0 0.0
    %2006 = vmatpush1.msra.mxu0 0.0
    %2007 = vmatprep.subr.mxu0 0.0
    %2008 = vmatpush1.msra.mxu0 0.0
    %2009 = vmatprep.subr.mxu0 0.0
    %2010 = vmatpush1.msra.mxu0 0.0
    %2011 = vmatprep.subr.mxu0 0.0
    %2012 = vmatpush1.msra.mxu0 0.0
    %2013 = vmatprep.subr.mxu0 0.0
    %2014 = vmatpush1.msra.mxu0 0.0
    %2015 = vmatprep.subr.mxu0 0.0
    %2016 = vmatpush1.msra.mxu0 0.0
    %2017 = vmatprep.subr.mxu0 0.0
    %2018 = vmatpush1.msra.mxu0 %v409
    %2019 = vmatprep.subr.mxu0 0.0
    %2020 = vmatpush1.msra.mxu0 %v408
    %2021 = vmatprep.subr.mxu0 0.0
    %2022 = vmatpush1.msra.mxu0 %v407
    %2023 = vmatprep.subr.mxu0 0.0
    %2024 = vmatpush1.msra.mxu0 %v406
    %2025 = vmatprep.subr.mxu0 0.0
    %2026 = vmatpush2.msra.mxu0 0.0
    %2027 = vmatprep.subr.mxu0 0.0
    %2028 = vmatpush2.msra.mxu0 0.0
    %2029 = vmatprep.subr.mxu0 0.0
    %2030 = vmatpush2.msra.mxu0 0.0
    %2031 = vmatprep.subr.mxu0 0.0
    %2032 = vmatpush2.msra.mxu0 0.0
    %2033 = vmatprep.subr.mxu0 0.0
    %2034 = vmatpush2.msra.mxu0 0.0
    %2035 = vmatprep.subr.mxu0 0.0
    %2036 = vmatpush2.msra.mxu0 0.0
    %2037 = vmatprep.subr.mxu0 0.0
    %2038 = vmatpush2.msra.mxu0 0.0
    %2039 = vmatprep.subr.mxu0 0.0
    %2040 = vmatpush2.msra.mxu0 0.0
    %2041 = vmatprep.subr.mxu0 0.0
    %2042 = vmatpush2.msra.mxu0 0.0
    %2043 = vmatprep.subr.mxu0 0.0
    %2044 = vmatpush2.msra.mxu0 0.0
    %2045 = vmatprep.subr.mxu0 0.0
    %2046 = vmatpush2.msra.mxu0 0.0
    %2047 = vmatprep.subr.mxu0 0.0
    %2048 = vmatpush2.msra.mxu0 0.0
    %2049 = vmatprep.subr.mxu0 0.0
    %2050 = vmatpush2.msra.mxu0 0.0
    %2051 = vmatprep.subr.mxu0 0.0
    %2052 = vmatpush2.msra.mxu0 0.0
    %2053 = vmatprep.subr.mxu0 0.0
    %2054 = vmatpush2.msra.mxu0 0.0
    %2055 = vmatprep.subr.mxu0 0.0
    %2056 = vmatpush2.msra.mxu0 0.0
    %2057 = vmatprep.mubr.f32.mxu0 0.0
    %2058 = vmatmul.mubr.f32.gmra.mxu0 %v1991
    %v2059 = vpop.f32.mrf.mxu0
    %v2060 = vadd.f32 0.0, %v2059
    %v2061 = vpop.f32.mrf.mxu0
    %2062 = vdwg.mxu0
    %v2063 = vadd.f32 %v387, %v2060
    %v2064 = vmul.f32 %v426, %v2063
    %v2065 = vtanh.pop %v2064
    %v2066 = vmul.f32 %v426, %v2065
    %v2067 = vadd.f32 %v2066, %v427
    %v2069 = vrot.slane %v1980, 6
    %v2071 = vmul.f32 %v2067, %v2069
    %2073 = vrot.lane.b32.xlu0 %v2067, 64
    %v2074 = vpop.permute.xlu0 %2073
    %v2076 = vmul.f32 %v2067, %v2074
    %2078 = vrot.lane.b32.xlu0 %v2076, 32
    %v2079 = vpop.permute.xlu0 %2078
    %v2081 = vadd.f32 %v2071, %v2079
    %v2082 = vtanh.pop %v2081
    %2084 = vrot.lane.b32.xlu0 %v2082, 64
    %v2085 = vpop.permute.xlu0 %2084
    %v2087 = vmul.f32 %v2067, %v2085
    %2089 = vrot.lane.b32.xlu0 %v2087, 32
    %v2090 = vpop.permute.xlu0 %2089
    %v2091 = vsel %vm1386, %v2090, 0
    %2093 = vmatprep.subr.mxu0 0.0
    %2094 = vmatpush1.msra.mxu0 0.0
    %2095 = vmatprep.subr.mxu0 0.0
    %2096 = vmatpush1.msra.mxu0 0.0
    %2097 = vmatprep.subr.mxu0 0.0
    %2098 = vmatpush1.msra.mxu0 0.0
    %2099 = vmatprep.subr.mxu0 0.0
    %2100 = vmatpush1.msra.mxu0 0.0
    %2101 = vmatprep.subr.mxu0 0.0
    %2102 = vmatpush1.msra.mxu0 0.0
    %2103 = vmatprep.subr.mxu0 0.0
    %2104 = vmatpush1.msra.mxu0 0.0
    %2105 = vmatprep.subr.mxu0 0.0
    %2106 = vmatpush1.msra.mxu0 0.0
    %2107 = vmatprep.subr.mxu0 0.0
    %2108 = vmatpush1.msra.mxu0 0.0
    %2109 = vmatprep.subr.mxu0 0.0
    %2110 = vmatpush1.msra.mxu0 0.0
    %2111 = vmatprep.subr.mxu0 0.0
    %2112 = vmatpush1.msra.mxu0 0.0
    %2113 = vmatprep.subr.mxu0 0.0
    %2114 = vmatpush1.msra.mxu0 0.0
    %2115 = vmatprep.subr.mxu0 0.0
    %2116 = vmatpush1.msra.mxu0 0.0
    %2117 = vmatprep.subr.mxu0 0.0
    %2118 = vmatpush1.msra.mxu0 %v409
    %2119 = vmatprep.subr.mxu0 0.0
    %2120 = vmatpush1.msra.mxu0 %v408
    %2121 = vmatprep.subr.mxu0 0.0
    %2122 = vmatpush1.msra.mxu0 %v407
    %2123 = vmatprep.subr.mxu0 0.0
    %2124 = vmatpush1.msra.mxu0 %v406
    %2125 = vmatprep.subr.mxu0 0.0
    %2126 = vmatpush2.msra.mxu0 0.0
    %2127 = vmatprep.subr.mxu0 0.0
    %2128 = vmatpush2.msra.mxu0 0.0
    %2129 = vmatprep.subr.mxu0 0.0
    %2130 = vmatpush2.msra.mxu0 0.0
    %2131 = vmatprep.subr.mxu0 0.0
    %2132 = vmatpush2.msra.mxu0 0.0
    %2133 = vmatprep.subr.mxu0 0.0
    %2134 = vmatpush2.msra.mxu0 0.0
    %2135 = vmatprep.subr.mxu0 0.0
    %2136 = vmatpush2.msra.mxu0 0.0
    %2137 = vmatprep.subr.mxu0 0.0
    %2138 = vmatpush2.msra.mxu0 0.0
    %2139 = vmatprep.subr.mxu0 0.0
    %2140 = vmatpush2.msra.mxu0 0.0
    %2141 = vmatprep.subr.mxu0 0.0
    %2142 = vmatpush2.msra.mxu0 0.0
    %2143 = vmatprep.subr.mxu0 0.0
    %2144 = vmatpush2.msra.mxu0 0.0
    %2145 = vmatprep.subr.mxu0 0.0
    %2146 = vmatpush2.msra.mxu0 0.0
    %2147 = vmatprep.subr.mxu0 0.0
    %2148 = vmatpush2.msra.mxu0 0.0
    %2149 = vmatprep.subr.mxu0 0.0
    %2150 = vmatpush2.msra.mxu0 0.0
    %2151 = vmatprep.subr.mxu0 0.0
    %2152 = vmatpush2.msra.mxu0 0.0
    %2153 = vmatprep.subr.mxu0 0.0
    %2154 = vmatpush2.msra.mxu0 0.0
    %2155 = vmatprep.subr.mxu0 0.0
    %2156 = vmatpush2.msra.mxu0 0.0
    %2157 = vmatprep.mubr.f32.mxu0 0.0
    %2158 = vmatmul.mubr.f32.gmra.mxu0 %v2091
    %v2159 = vpop.f32.mrf.mxu0
    %v2160 = vadd.f32 0.0, %v2159
    %v2161 = vpop.f32.mrf.mxu0
    %2162 = vdwg.mxu0
    %v2164 = vrot.slane %v2160, 6
    %v2166 = vadd.f32 %v387, %v2164
    %v2167 = vmul.f32 %v426, %v2166
    %v2168 = vtanh.pop %v2167
    %v2169 = vmul.f32 %v426, %v2168
    %v2170 = vadd.f32 %v2169, %v427
    %v2172 = vrot.slane %v2081, 6
    %v2174 = vmul.f32 %v2170, %v2172
    %2176 = vrot.lane.b32.xlu0 %v2170, 64
    %v2177 = vpop.permute.xlu0 %2176
    %v2179 = vmul.f32 %v2170, %v2177
    %2181 = vrot.lane.b32.xlu0 %v2179, 32
    %v2182 = vpop.permute.xlu0 %2181
    %v2184 = vadd.f32 %v2174, %v2182
    %v2185 = vtanh.pop %v2184
    %2187 = vrot.lane.b32.xlu0 %v2185, 64
    %v2188 = vpop.permute.xlu0 %2187
    %v2190 = vmul.f32 %v2170, %v2188
    %v2192 = vrot.slane %v2190, 2
    %2193 = vrot.lane.b32.xlu0 %v2192, 32
    %v2194 = vpop.permute.xlu0 %2193
    %v2195 = vsel %vm1386, %v2194, 0
    %2197 = vmatprep.subr.mxu0 0.0
    %2198 = vmatpush1.msra.mxu0 0.0
    %2199 = vmatprep.subr.mxu0 0.0
    %2200 = vmatpush1.msra.mxu0 0.0
    %2201 = vmatprep.subr.mxu0 0.0
    %2202 = vmatpush1.msra.mxu0 0.0
    %2203 = vmatprep.subr.mxu0 0.0
    %2204 = vmatpush1.msra.mxu0 0.0
    %2205 = vmatprep.subr.mxu0 0.0
    %2206 = vmatpush1.msra.mxu0 0.0
    %2207 = vmatprep.subr.mxu0 0.0
    %2208 = vmatpush1.msra.mxu0 0.0
    %2209 = vmatprep.subr.mxu0 0.0
    %2210 = vmatpush1.msra.mxu0 0.0
    %2211 = vmatprep.subr.mxu0 0.0
    %2212 = vmatpush1.msra.mxu0 0.0
    %2213 = vmatprep.subr.mxu0 0.0
    %2214 = vmatpush1.msra.mxu0 0.0
    %2215 = vmatprep.subr.mxu0 0.0
    %2216 = vmatpush1.msra.mxu0 0.0
    %2217 = vmatprep.subr.mxu0 0.0
    %2218 = vmatpush1.msra.mxu0 0.0
    %2219 = vmatprep.subr.mxu0 0.0
    %2220 = vmatpush1.msra.mxu0 0.0
    %2221 = vmatprep.subr.mxu0 0.0
    %2222 = vmatpush1.msra.mxu0 %v409
    %2223 = vmatprep.subr.mxu0 0.0
    %2224 = vmatpush1.msra.mxu0 %v408
    %2225 = vmatprep.subr.mxu0 0.0
    %2226 = vmatpush1.msra.mxu0 %v407
    %2227 = vmatprep.subr.mxu0 0.0
    %2228 = vmatpush1.msra.mxu0 %v406
    %2229 = vmatprep.subr.mxu0 0.0
    %2230 = vmatpush2.msra.mxu0 0.0
    %2231 = vmatprep.subr.mxu0 0.0
    %2232 = vmatpush2.msra.mxu0 0.0
    %2233 = vmatprep.subr.mxu0 0.0
    %2234 = vmatpush2.msra.mxu0 0.0
    %2235 = vmatprep.subr.mxu0 0.0
    %2236 = vmatpush2.msra.mxu0 0.0
    %2237 = vmatprep.subr.mxu0 0.0
    %2238 = vmatpush2.msra.mxu0 0.0
    %2239 = vmatprep.subr.mxu0 0.0
    %2240 = vmatpush2.msra.mxu0 0.0
    %2241 = vmatprep.subr.mxu0 0.0
    %2242 = vmatpush2.msra.mxu0 0.0
    %2243 = vmatprep.subr.mxu0 0.0
    %2244 = vmatpush2.msra.mxu0 0.0
    %2245 = vmatprep.subr.mxu0 0.0
    %2246 = vmatpush2.msra.mxu0 0.0
    %2247 = vmatprep.subr.mxu0 0.0
    %2248 = vmatpush2.msra.mxu0 0.0
    %2249 = vmatprep.subr.mxu0 0.0
    %2250 = vmatpush2.msra.mxu0 0.0
    %2251 = vmatprep.subr.mxu0 0.0
    %2252 = vmatpush2.msra.mxu0 0.0
    %2253 = vmatprep.subr.mxu0 0.0
    %2254 = vmatpush2.msra.mxu0 0.0
    %2255 = vmatprep.subr.mxu0 0.0
    %2256 = vmatpush2.msra.mxu0 0.0
    %2257 = vmatprep.subr.mxu0 0.0
    %2258 = vmatpush2.msra.mxu0 0.0
    %2259 = vmatprep.subr.mxu0 0.0
    %2260 = vmatpush2.msra.mxu0 0.0
    %2261 = vmatprep.mubr.f32.mxu0 0.0
    %2262 = vmatmul.mubr.f32.gmra.mxu0 %v2195
    %v2263 = vpop.f32.mrf.mxu0
    %v2264 = vadd.f32 0.0, %v2263
    %v2265 = vpop.f32.mrf.mxu0
    %2266 = vdwg.mxu0
    %v2268 = vrot.slane %v2264, 4
    %v2270 = vadd.f32 %v387, %v2268
    %v2271 = vmul.f32 %v426, %v2270
    %v2272 = vtanh.pop %v2271
    %v2273 = vmul.f32 %v426, %v2272
    %v2274 = vadd.f32 %v2273, %v427
    %v2276 = vrot.slane %v2184, 6
    %v2278 = vmul.f32 %v2274, %v2276
    %2280 = vrot.lane.b32.xlu0 %v2274, 64
    %v2281 = vpop.permute.xlu0 %2280
    %v2283 = vmul.f32 %v2274, %v2281
    %2285 = vrot.lane.b32.xlu0 %v2283, 32
    %v2286 = vpop.permute.xlu0 %2285
    %v2288 = vadd.f32 %v2278, %v2286
    %v2289 = vtanh.pop %v2288
    %2291 = vrot.lane.b32.xlu0 %v2289, 64
    %v2292 = vpop.permute.xlu0 %2291
    %v2294 = vmul.f32 %v2274, %v2292
    %2296 = vrot.lane.b32.xlu0 %v1675, 64
    %v2297 = vpop.permute.xlu0 %2296
    %2299 = vrot.lane.b32.xlu0 %v1780, 96
    %v2300 = vpop.permute.xlu0 %2299
    %2304 = vrot.lane.b32.xlu0 %v2087, 64
    %v2305 = vpop.permute.xlu0 %2304
    %2307 = vrot.lane.b32.xlu0 %v2192, 96
    %v2308 = vpop.permute.xlu0 %2307
    %v2311 = vrot.slane %v2294, 4
    %v2313 = vsel %vm1386, %v1581, %v2297
    %v2314 = vsel %vm436, %v2313, %v2300
    %vm2315 = vcmask 785408
    %v2316 = vsel %vm2315, %v2314, %v1884
    %v2317 = vsel %vm1386, %v1990, %v2305
    %v2318 = vsel %vm436, %v2317, %v2308
    %v2319 = vsel %vm2315, %v2318, %v2311
    %v2320 = vld [vmem:[#allocation9] sm:$0xff]
    %v2321 = vld [vmem:[#allocation9 + $0x8] sm:$0xff]
    %v2322 = vld [vmem:[#allocation9 + $0x10] sm:$0xff]
    %v2323 = vld [vmem:[#allocation9 + $0x18] sm:$0xff]
    %v2324 = vld [vmem:[#allocation9 + $0x20] sm:$0xff]
    %v2325 = vld [vmem:[#allocation9 + $0x28] sm:$0xff]
    %v2326 = vld [vmem:[#allocation9 + $0x30] sm:$0xff]
    %v2327 = vld [vmem:[#allocation9 + $0x38] sm:$0xff]
    %v2328 = vld [vmem:[#allocation9 + $0x40] sm:$0xff]
    %v2329 = vld [vmem:[#allocation9 + $0x48] sm:$0xff]
    %v2330 = vld [vmem:[#allocation9 + $0x50] sm:$0xff]
    %v2331 = vld [vmem:[#allocation9 + $0x58] sm:$0xff]
    %v2332 = vld [vmem:[#allocation9 + $0x60] sm:$0xff]
    %v2333 = vld [vmem:[#allocation9 + $0x68] sm:$0xff]
    %v2334 = vld [vmem:[#allocation9 + $0x70] sm:$0xff]
    %v2335 = vld [vmem:[#allocation9 + $0x78] sm:$0xff]
    %v2336 = vld [vmem:[#allocation9 + $0x80] sm:$0xff]
    %v2337 = vld [vmem:[#allocation9 + $0x88] sm:$0xff]
    %v2338 = vld [vmem:[#allocation9 + $0x90] sm:$0xff]
    %v2339 = vld [vmem:[#allocation9 + $0x98] sm:$0xff]
    %v2340 = vld [vmem:[#allocation9 + $0xa0] sm:$0xff]
    %v2341 = vld [vmem:[#allocation9 + $0xa8] sm:$0xff]
    %v2342 = vld [vmem:[#allocation9 + $0xb0] sm:$0xff]
    %v2343 = vld [vmem:[#allocation9 + $0xb8] sm:$0xff]
    %v2344 = vld [vmem:[#allocation9 + $0xc0] sm:$0xff]
    %v2345 = vld [vmem:[#allocation9 + $0xc8] sm:$0xff]
    %v2346 = vld [vmem:[#allocation9 + $0xd0] sm:$0xff]
    %v2347 = vld [vmem:[#allocation9 + $0xd8] sm:$0xff]
    %v2348 = vld [vmem:[#allocation9 + $0xe0] sm:$0xff]
    %v2349 = vld [vmem:[#allocation9 + $0xe8] sm:$0xff]
    %v2350 = vld [vmem:[#allocation9 + $0xf0] sm:$0xff]
    %v2351 = vld [vmem:[#allocation9 + $0xf8] sm:$0xff]
    %v2352 = vld [vmem:[#allocation10] sm:$0x3]
    %v2354 = vlaneseq
    %v2355 = vshrl.u32 %v2354, 7
    %v2356 = vsub.s32 0, %v2355
    %v2357 = vrot.slane %v2352, %v2356
    %v2358 = vlaneseq
    %v2359 = vshrl.u32 %v2358, 7
    %v2360 = vsub.s32 1, %v2359
    %v2361 = vrot.slane %v2352, %v2360
    %2362 = vrot.lane.b32.xlu0 %v2357, 64
    %v2363 = vpop.permute.xlu0 %2362
    %2364 = vrot.lane.b32.xlu0 %v2361, 64
    %v2365 = vpop.permute.xlu0 %2364
    %v2366 = vsel %vm436, %v2363, %v2365
    %2368 = vmatprep.subr.mxu0 0.0
    %2369 = vmatpush1.msra.mxu0 %v2335
    %2370 = vmatprep.subr.mxu0 0.0
    %2371 = vmatpush1.msra.mxu0 %v2334
    %2372 = vmatprep.subr.mxu0 0.0
    %2373 = vmatpush1.msra.mxu0 %v2333
    %2374 = vmatprep.subr.mxu0 0.0
    %2375 = vmatpush1.msra.mxu0 %v2332
    %2376 = vmatprep.subr.mxu0 0.0
    %2377 = vmatpush1.msra.mxu0 %v2331
    %2378 = vmatprep.subr.mxu0 0.0
    %2379 = vmatpush1.msra.mxu0 %v2330
    %2380 = vmatprep.subr.mxu0 0.0
    %2381 = vmatpush1.msra.mxu0 %v2329
    %2382 = vmatprep.subr.mxu0 0.0
    %2383 = vmatpush1.msra.mxu0 %v2328
    %2384 = vmatprep.subr.mxu0 0.0
    %2385 = vmatpush1.msra.mxu0 %v2327
    %2386 = vmatprep.subr.mxu0 0.0
    %2387 = vmatpush1.msra.mxu0 %v2326
    %2388 = vmatprep.subr.mxu0 0.0
    %2389 = vmatpush1.msra.mxu0 %v2325
    %2390 = vmatprep.subr.mxu0 0.0
    %2391 = vmatpush1.msra.mxu0 %v2324
    %2392 = vmatprep.subr.mxu0 0.0
    %2393 = vmatpush1.msra.mxu0 %v2323
    %2394 = vmatprep.subr.mxu0 0.0
    %2395 = vmatpush1.msra.mxu0 %v2322
    %2396 = vmatprep.subr.mxu0 0.0
    %2397 = vmatpush1.msra.mxu0 %v2321
    %2398 = vmatprep.subr.mxu0 0.0
    %2399 = vmatpush1.msra.mxu0 %v2320
    %2400 = vmatprep.subr.mxu0 0.0
    %2401 = vmatpush2.msra.mxu0 %v2351
    %2402 = vmatprep.subr.mxu0 0.0
    %2403 = vmatpush2.msra.mxu0 %v2350
    %2404 = vmatprep.subr.mxu0 0.0
    %2405 = vmatpush2.msra.mxu0 %v2349
    %2406 = vmatprep.subr.mxu0 0.0
    %2407 = vmatpush2.msra.mxu0 %v2348
    %2408 = vmatprep.subr.mxu0 0.0
    %2409 = vmatpush2.msra.mxu0 %v2347
    %2410 = vmatprep.subr.mxu0 0.0
    %2411 = vmatpush2.msra.mxu0 %v2346
    %2412 = vmatprep.subr.mxu0 0.0
    %2413 = vmatpush2.msra.mxu0 %v2345
    %2414 = vmatprep.subr.mxu0 0.0
    %2415 = vmatpush2.msra.mxu0 %v2344
    %2416 = vmatprep.subr.mxu0 0.0
    %2417 = vmatpush2.msra.mxu0 %v2343
    %2418 = vmatprep.subr.mxu0 0.0
    %2419 = vmatpush2.msra.mxu0 %v2342
    %2420 = vmatprep.subr.mxu0 0.0
    %2421 = vmatpush2.msra.mxu0 %v2341
    %2422 = vmatprep.subr.mxu0 0.0
    %2423 = vmatpush2.msra.mxu0 %v2340
    %2424 = vmatprep.subr.mxu0 0.0
    %2425 = vmatpush2.msra.mxu0 %v2339
    %2426 = vmatprep.subr.mxu0 0.0
    %2427 = vmatpush2.msra.mxu0 %v2338
    %2428 = vmatprep.subr.mxu0 0.0
    %2429 = vmatpush2.msra.mxu0 %v2337
    %2430 = vmatprep.subr.mxu0 0.0
    %2431 = vmatpush2.msra.mxu0 %v2336
    %2432 = vmatprep.mubr.f32.mxu0 %v2319
    %2433 = vmatmul.mubr.f32.gmra.mxu0 %v2316
    %v2434 = vpop.f32.mrf.mxu0
    %v2435 = vadd.f32 %v2366, %v2434
    %v2436 = vpop.f32.mrf.mxu0
    %2437 = vdwg.mxu0
    %2438 = vst [vmem:[%s11] sm:$0x3] %v2435
    // Predicated region
    $region66: #{vae_forward.1} parent=1 // pred_check
      _
    $region67: #{vae_forward.1} parent=1 // pred_check_branch
      %2440 = sbr.rel (0) target = $region69
    $region68: #{vae_forward.1} parent=1 // pred_region
      _
    $region69: #{vae_forward.1} parent=1 // pred_fallthru
      _
    // Predicated region
    $region70: #{vae_forward.1} parent=1 // pred_check
      _
    $region71: #{vae_forward.1} parent=1 // pred_check_branch
      %2442 = sbr.rel (0) target = $region73
    $region72: #{vae_forward.1} parent=1 // pred_region
      _
    $region73: #{vae_forward.1} parent=1 // pred_fallthru
      _
    // Predicated region
    $region74: #{vae_forward.1} parent=1 // pred_check
      _
    $region75: #{vae_forward.1} parent=1 // pred_check_branch
      %2444 = sbr.rel (0) target = $region77
    $region76: #{vae_forward.1} parent=1 // pred_region
      _
    $region77: #{vae_forward.1} parent=1 // pred_fallthru
      _
    // Predicated region
    $region78: #{vae_forward.1} parent=1 // pred_check
      _
    $region79: #{vae_forward.1} parent=1 // pred_check_branch
      %2446 = sbr.rel (0) target = $region81
    $region80: #{vae_forward.1} parent=1 // pred_region
      _
    $region81: #{vae_forward.1} parent=1 // pred_fallthru
      _
    %2447 = vsyncpa [#allocation3], 1
    %2448 = vsyncpa [#allocation5], 1
    %2449 = vsyncpa [#allocation8], 1
    %2450 = vsyncpa [#allocation11], 1

</llo_original>
